<compile_context>
chip_gen: v7x
topology: tpu7x:2x2x1
jax: 0.10.0
libtpu: 0.0.40
codegen_flags: <defaults>
</compile_context>

<pallas_src>
import jax
import jax.numpy as jnp
from jax import lax
from jax.experimental import pallas as pl
from jax.experimental.pallas import tpu as pltpu

EPS = 1e-5          # nn.BatchNorm2d default eps
NEG_SLOPE = 0.01    # nn.LeakyReLU default negative_slope
MAX_TILE_M = 512    # mem-bound passes hit ~85% of HBM roofline at 512-row tiles


def _leaky(x):
    return jnp.where(x >= 0, x, NEG_SLOPE * x)


def _round_up(n, m):
    return ((n + m - 1) // m) * m


def _pick_tile_m(m):
    """Large tiles for the HBM roofline, but keep >= 2 grid steps when m allows so
    both v7x TensorCores get work under dimension_semantics=("parallel",)."""
    if m <= 256:
        return m                       # single full-extent block (always legal)
    half = -(-m // 2)
    return max(128, min(MAX_TILE_M, _round_up(half, 128)))


def _mosaic_params(tile_bytes):
    # Explicit VMEM budget (review: do not rely on the 32 MiB scoped default,
    # especially on v7x's 64 MiB physical VMEM). ~3x covers double buffering +
    # compiler scratch, clamped to a safe ceiling.
    limit = int(min(max(3 * tile_bytes + (4 << 20), 16 << 20), 48 << 20))
    return pltpu.CompilerParams(dimension_semantics=("parallel",),
                                vmem_limit_bytes=limit)


# ----------------------------- Pallas kernels ----------------------------- #

def _make_conv_stats_kernel(tile_m, m_total):
    """Pass 1: y = P @ W (bf16 in, f32 acc) -> bf16 y tile + per-tile BN partials."""
    needs_mask = (m_total % tile_m) != 0

    def kernel(p_ref, w_ref, y_ref, stats_ref):
        y = jnp.dot(p_ref[...], w_ref[...], preferred_element_type=jnp.float32)
        if needs_mask:
            # Ragged last tile: rows >= m_total hold unspecified data; exclude them
            # from the statistics (stores past m_total are clipped automatically).
            row = lax.broadcasted_iota(jnp.int32, y.shape, 0)
            valid = (pl.program_id(0) * tile_m + row) < m_total
            ym = jnp.where(valid, y, 0.0)
        else:
            ym = y
        y_ref[...] = y.astype(y_ref.dtype)                       # bf16 writeback
        stats_ref[0, 0:1, :] = jnp.sum(ym, axis=0, keepdims=True)        # sum
        stats_ref[0, 1:2, :] = jnp.sum(ym * ym, axis=0, keepdims=True)   # sum of squares

    return kernel


def _bn_act_kernel(y_ref, ss_ref, o_ref):
    """Pass 2: folded BN (scale/shift) + LeakyReLU on one M tile."""
    z = y_ref[...].astype(jnp.float32) * ss_ref[0:1, :] + ss_ref[1:2, :]
    o_ref[...] = _leaky(z).astype(o_ref.dtype)


def _bn_add_act_kernel(y_ref, ss_ref, r_ref, o_ref):
    """Pass 2: folded BN + residual add + LeakyReLU on one M tile."""
    z = (y_ref[...].astype(jnp.float32) * ss_ref[0:1, :] + ss_ref[1:2, :]
         + r_ref[...].astype(jnp.float32))
    o_ref[...] = _leaky(z).astype(o_ref.dtype)


def _matmul_bias_kernel(p_ref, w_ref, b_ref, o_ref):
    """Projection conv (no BN follows): matmul + bias on one M tile."""
    y = jnp.dot(p_ref[...], w_ref[...], preferred_element_type=jnp.float32)
    o_ref[...] = (y + b_ref[...]).astype(o_ref.dtype)


# ------------------------------- JAX glue --------------------------------- #

def _im2col(x_nhwc, k, padding, dilation):
    """Extract conv patches (stride 1). Returns ([M, k*k*C], (N, Ho, Wo))."""
    n, h, w, c = x_nhwc.shape
    xp = jnp.pad(x_nhwc, ((0, 0), (padding, padding), (padding, padding), (0, 0)))
    h_out = h + 2 * padding - dilation * (k - 1)
    w_out = w + 2 * padding - dilation * (k - 1)
    cols = []
    for i in range(k):
        for j in range(k):
            di, dj = i * dilation, j * dilation
            cols.append(xp[:, di:di + h_out, dj:dj + w_out, :])
    patches = jnp.concatenate(cols, axis=-1)        # [N, Ho, Wo, k*k*C] (single materialization)
    return patches.reshape(n * h_out * w_out, k * k * c), (n, h_out, w_out)


def _w_mat(w_oihw):
    """[Cout, Cin, KH, KW] (torch layout) -> [KH*KW*Cin, Cout] matching im2col columns."""
    co, ci, kh, kw = w_oihw.shape
    return jnp.transpose(w_oihw, (2, 3, 1, 0)).reshape(kh * kw * ci, co)


def _conv_bn_act_stage(patches, w_oihw, gamma, beta, residual, out_dtype):
    """Fused conv (no bias) -> training-mode BN -> (+residual) -> LeakyReLU.

    patches: (M, K) bf16; residual: (M, Cout) bf16 or None; returns (M, Cout) out_dtype.
    """
    m, k_dim = patches.shape
    c_out = w_oihw.shape[0]
    tile_m = _pick_tile_m(m)
    num_tiles = pl.cdiv(m, tile_m)
    wmat = _w_mat(w_oihw).astype(jnp.bfloat16)

    # ---- pass 1: conv matmul -> bf16 y + per-tile partial BN statistics ----
    blk1 = tile_m * k_dim * 2 + k_dim * c_out * 2 + tile_m * c_out * 2 + 2 * c_out * 4
    y_bf16, stats = pl.pallas_call(
        _make_conv_stats_kernel(tile_m, m),
        out_shape=(jax.ShapeDtypeStruct((m, c_out), jnp.bfloat16),
                   jax.ShapeDtypeStruct((num_tiles, 2, c_out), jnp.float32)),
        grid=(num_tiles,),
        in_specs=[pl.BlockSpec((tile_m, k_dim), lambda i: (i, 0)),
                  pl.BlockSpec((k_dim, c_out), lambda i: (0, 0))],
        out_specs=(pl.BlockSpec((tile_m, c_out), lambda i: (i, 0)),
                   pl.BlockSpec((1, 2, c_out), lambda i: (i, 0, 0))),
        compiler_params=_mosaic_params(blk1),
    )(patches, wmat)

    # ---- tiny per-channel math: per-tile mean/M2 + Chan combine -> fold BN ----
    counts = jnp.asarray([tile_m] * (num_tiles - 1) + [m - (num_tiles - 1) * tile_m],
                         dtype=jnp.float32)[:, None]
    sums, sqs = stats[:, 0, :], stats[:, 1, :]
    mean_t = sums / counts
    m2_t = jnp.maximum(sqs - counts * mean_t * mean_t, 0.0)
    mean = jnp.sum(sums, axis=0) / m
    m2 = jnp.sum(m2_t, axis=0) + jnp.sum(counts * jnp.square(mean_t - mean), axis=0)
    var = m2 / m                                        # biased variance (BN training mode)
    scale = gamma.astype(jnp.float32) * lax.rsqrt(var + EPS)
    shift = beta.astype(jnp.float32) - mean * scale
    ss = jnp.stack([scale, shift], axis=0)              # (2, Cout) f32

    # ---- pass 2: normalize + affine (+ residual) + LeakyReLU ----
    if residual is None:
        kernel, ins = _bn_act_kernel, (y_bf16, ss)
        in_specs = [pl.BlockSpec((tile_m, c_out), lambda i: (i, 0)),
                    pl.BlockSpec((2, c_out), lambda i: (0, 0))]
    else:
        kernel, ins = _bn_add_act_kernel, (y_bf16, ss, residual)
        in_specs = [pl.BlockSpec((tile_m, c_out), lambda i: (i, 0)),
                    pl.BlockSpec((2, c_out), lambda i: (0, 0)),
                    pl.BlockSpec((tile_m, c_out), lambda i: (i, 0))]
    blk2 = tile_m * c_out * (2 + 2 + 4) + 2 * c_out * 4
    out = pl.pallas_call(
        kernel,
        out_shape=jax.ShapeDtypeStruct((m, c_out), out_dtype),
        grid=(num_tiles,),
        in_specs=in_specs,
        out_specs=pl.BlockSpec((tile_m, c_out), lambda i: (i, 0)),
        compiler_params=_mosaic_params(blk2),
    )(*ins)
    return out


def _projection_conv(patches, w_oihw, bias):
    """Plain conv (matmul + bias) producing the bf16 residual. Bias kept: no BN follows."""
    m, k_dim = patches.shape
    c_out = w_oihw.shape[0]
    tile_m = _pick_tile_m(m)
    num_tiles = pl.cdiv(m, tile_m)
    wmat = _w_mat(w_oihw).astype(jnp.bfloat16)
    b = bias.astype(jnp.float32).reshape(1, c_out)

    blk = tile_m * k_dim * 2 + k_dim * c_out * 2 + tile_m * c_out * 2 + c_out * 4
    out = pl.pallas_call(
        _matmul_bias_kernel,
        out_shape=jax.ShapeDtypeStruct((m, c_out), jnp.bfloat16),
        grid=(num_tiles,),
        in_specs=[pl.BlockSpec((tile_m, k_dim), lambda i: (i, 0)),
                  pl.BlockSpec((k_dim, c_out), lambda i: (0, 0)),
                  pl.BlockSpec((1, c_out), lambda i: (0, 0))],
        out_specs=pl.BlockSpec((tile_m, c_out), lambda i: (i, 0)),
        compiler_params=_mosaic_params(blk),
    )(patches, wmat, b)
    return out


def init_params(key, c_in, num_filters, kernel_size, bias):
    ks = jax.random.split(key, 6)
    fan1 = c_in * kernel_size * kernel_size
    fan2 = num_filters * kernel_size * kernel_size

    def u(k, shape, fan):
        bound = 1.0 / float(fan) ** 0.5
        return jax.random.uniform(k, shape, jnp.float32, -bound, bound)

    return {
        'conv1_w': u(ks[0], (num_filters, c_in, kernel_size, kernel_size), fan1),
        'conv1_b': (u(ks[1], (num_filters,), fan1) if bias
                    else jnp.zeros((num_filters,), jnp.float32)),
        'conv2_w': u(ks[2], (num_filters, num_filters, kernel_size, kernel_size), fan2),
        'conv2_b': (u(ks[3], (num_filters,), fan2) if bias
                    else jnp.zeros((num_filters,), jnp.float32)),
        # BatchNorm2d default init: gamma=1, beta=0
        'bn1_gamma': jnp.ones((num_filters,), jnp.float32),
        'bn1_beta': jnp.zeros((num_filters,), jnp.float32),
        'bn2_gamma': jnp.ones((num_filters,), jnp.float32),
        'bn2_beta': jnp.zeros((num_filters,), jnp.float32),
        # projection conv used when identity shape != output shape
        'proj_w': u(ks[4], (num_filters, c_in, kernel_size, kernel_size), fan1),
        'proj_b': (u(ks[5], (num_filters,), fan1) if bias
                   else jnp.zeros((num_filters,), jnp.float32)),
    }


def residual_block_forward(x_nchw, params, *, kernel_size, padding, dilation):
    n, c_in, h, w = x_nchw.shape
    c_out = params['conv1_w'].shape[0]
    # Single NHWC bf16 materialization of x: feeds both im2col and the residual path.
    x_bf16 = jnp.transpose(x_nchw, (0, 2, 3, 1)).astype(jnp.bfloat16)

    # ---- conv1 -> bn1 -> LeakyReLU (conv1 bias cancelled exactly by training-mode BN) ----
    p1, (n1, ho1, wo1) = _im2col(x_bf16, kernel_size, padding, dilation)
    h1 = _conv_bn_act_stage(p1, params['conv1_w'], params['bn1_gamma'],
                            params['bn1_beta'], residual=None, out_dtype=jnp.bfloat16)
    h1_nhwc = h1.reshape(n1, ho1, wo1, c_out)          # already bf16: no extra cast pass

    # ---- conv2 patches (output spatial size) ----
    p2, (n2, ho2, wo2) = _im2col(h1_nhwc, kernel_size, padding, dilation)
    m2 = n2 * ho2 * wo2

    # ---- residual path (bf16) ----
    if (n, c_in, h, w) == (n2, c_out, ho2, wo2):
        res = x_bf16.reshape(m2, c_out)
    else:
        # TODO(synk): the PyTorch module instantiates a *freshly random* Conv2d on every
        # forward in this branch; here we use a fixed, deterministic projection conv.
        # (p1 is reused: the projection sees the same input/kernel config as conv1.)
        res = _projection_conv(p1, params['proj_w'], params['proj_b'])

    # ---- conv2 -> bn2 -> (+ identity) -> LeakyReLU ----
    out = _conv_bn_act_stage(p2, params['conv2_w'], params['bn2_gamma'],
                             params['bn2_beta'], residual=res, out_dtype=jnp.float32)
    out_nhwc = out.reshape(n2, ho2, wo2, c_out)
    # NCHW to match the PyTorch contract (drop this transpose if downstream takes NHWC).
    return jnp.transpose(out_nhwc, (0, 3, 1, 2))


# --------------------------- pure-JAX reference ---------------------------- #

def _ref_forward(x_nchw, params, *, kernel_size, padding, dilation):
    def conv(x, wt, b):
        y = lax.conv_general_dilated(
            x, wt, window_strides=(1, 1),
            padding=[(padding, padding), (padding, padding)],
            rhs_dilation=(dilation, dilation),
            dimension_numbers=('NCHW', 'OIHW', 'NCHW'))
        return y + b.reshape(1, -1, 1, 1)

    def bn(x, g, bt):
        mean = jnp.mean(x, axis=(0, 2, 3), keepdims=True)
        var = jnp.mean(jnp.square(x - mean), axis=(0, 2, 3), keepdims=True)
        return (x - mean) * lax.rsqrt(var + EPS) * g.reshape(1, -1, 1, 1) + bt.reshape(1, -1, 1, 1)

    h1 = _leaky(bn(conv(x_nchw, params['conv1_w'], params['conv1_b']),
                   params['bn1_gamma'], params['bn1_beta']))
    y = bn(conv(h1, params['conv2_w'], params['conv2_b']),
           params['bn2_gamma'], params['bn2_beta'])
    ident = x_nchw
    if ident.shape != y.shape:
        ident = conv(ident, params['proj_w'], params['proj_b'])
    return _leaky(y + ident)


# ----------------------------------- main ---------------------------------- #

if __name__ == "__main__":
    # Small shapes consistent with the module: NCHW input, 3x3 conv, pad 1, dil 1
    N, C_IN, H, W = 2, 4, 16, 16
    NUM_FILTERS, KSIZE, PAD, DIL, BIAS = 4, 3, 1, 1, True

    key = jax.random.PRNGKey(0)
    kx, kp = jax.random.split(key)
    x = jax.random.normal(kx, (N, C_IN, H, W), jnp.float32)
    params = init_params(kp, C_IN, NUM_FILTERS, KSIZE, BIAS)

    fwd = jax.jit(lambda xx: residual_block_forward(
        xx, params, kernel_size=KSIZE, padding=PAD, dilation=DIL))
    out = jax.block_until_ready(fwd(x))

    ref = jax.block_until_ready(_ref_forward(
        x, params, kernel_size=KSIZE, padding=PAD, dilation=DIL))

    assert out.shape == ref.shape == (N, NUM_FILTERS, H, W)
    err = float(jnp.max(jnp.abs(out - ref)))
    # bf16 matmul inputs + bf16 y / h1 / residual intermediates vs f32 reference conv
    assert err < 8e-2, f"max abs err = {err}"

    print("KERNEL_OK")
</pallas_src>

<mosaic_0001>
module attributes {stable_mosaic.version = 11 : i64} {
  func.func @kernel(%arg0: i32, %arg1: memref<256x36xbf16, #tpu.memory_space<vmem>>, %arg2: memref<36x4xbf16, #tpu.memory_space<vmem>>, %arg3: memref<256x4xbf16, #tpu.memory_space<vmem>>, %arg4: memref<1x2x4xf32, #tpu.memory_space<vmem>>) attributes {dimension_semantics = [#tpu.dimension_semantics<parallel>], iteration_bounds = array<i64: 2>, scalar_prefetch = 0 : i64, scratch_operands = 0 : i64, tpu.core_type = #tpu.core_type<tc>, window_params = [{transform_indices = @transform_0, window_bounds = array<i64: 256, 36>}, {pipeline_mode = #tpu.pipeline_mode<synchronous>, transform_indices = @transform_1, window_bounds = array<i64: 36, 4>}, {transform_indices = @transform_2, window_bounds = array<i64: 256, 4>}, {transform_indices = @transform_3, window_bounds = array<i64: 1, 2, 4>}]} {
    %c0 = arith.constant 0 : index
    %c0_0 = arith.constant 0 : index
    %0 = vector.load %arg1[%c0, %c0_0] : memref<256x36xbf16, #tpu.memory_space<vmem>>, vector<256x36xbf16>
    %c0_1 = arith.constant 0 : index
    %c0_2 = arith.constant 0 : index
    %1 = vector.load %arg2[%c0_1, %c0_2] : memref<36x4xbf16, #tpu.memory_space<vmem>>, vector<36x4xbf16>
    %cst = arith.constant dense<0.000000e+00> : vector<256x4xf32>
    %2 = tpu.matmul %0, %1, %cst {dimension_numbers = #tpu.dot_dimension_numbers<[1], [0], [0], [1], [0, 0, 1, 1], [], []>} : vector<256x36xbf16>, vector<36x4xbf16>, vector<256x4xf32> -> vector<256x4xf32>
    %3 = arith.truncf %2 : vector<256x4xf32> to vector<256x4xbf16>
    %c0_3 = arith.constant 0 : index
    %c0_4 = arith.constant 0 : index
    %4 = vector.load %arg3[%c0_3, %c0_4] : memref<256x4xbf16, #tpu.memory_space<vmem>>, vector<256x4xbf16>
    tpu.vector_store %arg3[%c0_3, %c0_4], %3 {strides = array<i32>} : memref<256x4xbf16, #tpu.memory_space<vmem>>, vector<256x4xbf16>,
    %cst_5 = arith.constant dense<0.000000e+00> : vector<4xf32>
    %5 = vector.multi_reduction <add>, %2, %cst_5 [0] : vector<256x4xf32> to vector<4xf32>
    %6 = vector.shape_cast %5 : vector<4xf32> to vector<1x4xf32>
    %c0_6 = arith.constant 0 : index
    %c0_7 = arith.constant 0 : index
    %c0_8 = arith.constant 0 : index
    %7 = vector.load %arg4[%c0_6, %c0_7, %c0_8] : memref<1x2x4xf32, #tpu.memory_space<vmem>>, vector<1x1x4xf32>
    %8 = vector.shape_cast %7 : vector<1x1x4xf32> to vector<1x4xf32>
    %9 = vector.shape_cast %6 : vector<1x4xf32> to vector<1x1x4xf32>
    tpu.vector_store %arg4[%c0_6, %c0_7, %c0_8], %9 {strides = array<i32>} : memref<1x2x4xf32, #tpu.memory_space<vmem>>, vector<1x1x4xf32>,
    %10 = arith.mulf %2, %2 : vector<256x4xf32>
    %cst_9 = arith.constant dense<0.000000e+00> : vector<4xf32>
    %11 = vector.multi_reduction <add>, %10, %cst_9 [0] : vector<256x4xf32> to vector<4xf32>
    %12 = vector.shape_cast %11 : vector<4xf32> to vector<1x4xf32>
    %c0_10 = arith.constant 0 : index
    %c1 = arith.constant 1 : index
    %c0_11 = arith.constant 0 : index
    %13 = vector.load %arg4[%c0_10, %c1, %c0_11] : memref<1x2x4xf32, #tpu.memory_space<vmem>>, vector<1x1x4xf32>
    %14 = vector.shape_cast %13 : vector<1x1x4xf32> to vector<1x4xf32>
    %15 = vector.shape_cast %12 : vector<1x4xf32> to vector<1x1x4xf32>
    tpu.vector_store %arg4[%c0_10, %c1, %c0_11], %15 {strides = array<i32>} : memref<1x2x4xf32, #tpu.memory_space<vmem>>, vector<1x1x4xf32>,
    return
  }
  func.func @transform_0(%arg0: i32) -> (i32, i32) {
    %c0_i32 = arith.constant 0 : i32
    %c0_i32_0 = arith.constant 0 : i32
    return %arg0, %c0_i32 : i32, i32
  }
  func.func @transform_1(%arg0: i32) -> (i32, i32) {
    %c0_i32 = arith.constant 0 : i32
    %c0_i32_0 = arith.constant 0 : i32
    %c0_i32_1 = arith.constant 0 : i32
    return %c0_i32, %c0_i32_0 : i32, i32
  }
  func.func @transform_2(%arg0: i32) -> (i32, i32) {
    %c0_i32 = arith.constant 0 : i32
    %c0_i32_0 = arith.constant 0 : i32
    return %arg0, %c0_i32 : i32, i32
  }
  func.func @transform_3(%arg0: i32) -> (i32, i32, i32) {
    %c0_i32 = arith.constant 0 : i32
    %c0_i32_0 = arith.constant 0 : i32
    %c0_i32_1 = arith.constant 0 : i32
    return %arg0, %c0_i32, %c0_i32_0 : i32, i32, i32
  }
}

module attributes {stable_mosaic.version = 11 : i64} {
  func.func @_bn_act_kernel(%arg0: i32, %arg1: memref<256x4xbf16, #tpu.memory_space<vmem>>, %arg2: memref<2x4xf32, #tpu.memory_space<vmem>>, %arg3: memref<256x4xbf16, #tpu.memory_space<vmem>>) attributes {dimension_semantics = [#tpu.dimension_semantics<parallel>], iteration_bounds = array<i64: 2>, scalar_prefetch = 0 : i64, scratch_operands = 0 : i64, tpu.core_type = #tpu.core_type<tc>, window_params = [{transform_indices = @transform_0, window_bounds = array<i64: 256, 4>}, {pipeline_mode = #tpu.pipeline_mode<synchronous>, transform_indices = @transform_1, window_bounds = array<i64: 2, 4>}, {transform_indices = @transform_2, window_bounds = array<i64: 256, 4>}]} {
    %c0 = arith.constant 0 : index
    %c0_0 = arith.constant 0 : index
    %0 = vector.load %arg1[%c0, %c0_0] : memref<256x4xbf16, #tpu.memory_space<vmem>>, vector<256x4xbf16>
    %1 = arith.extf %0 : vector<256x4xbf16> to vector<256x4xf32>
    %c0_1 = arith.constant 0 : index
    %c0_2 = arith.constant 0 : index
    %2 = vector.load %arg2[%c0_1, %c0_2] : memref<2x4xf32, #tpu.memory_space<vmem>>, vector<1x4xf32>
    %3 = vector.broadcast %2 : vector<1x4xf32> to vector<256x4xf32>
    %4 = arith.mulf %1, %3 : vector<256x4xf32>
    %c1 = arith.constant 1 : index
    %c0_3 = arith.constant 0 : index
    %5 = vector.load %arg2[%c1, %c0_3] : memref<2x4xf32, #tpu.memory_space<vmem>>, vector<1x4xf32>
    %6 = vector.broadcast %5 : vector<1x4xf32> to vector<256x4xf32>
    %7 = arith.addf %4, %6 : vector<256x4xf32>
    %cst = arith.constant 0.000000e+00 : f32
    %8 = vector.broadcast %cst : f32 to vector<256x4xf32>
    %9 = arith.cmpf oge, %7, %8 : vector<256x4xf32>
    %cst_4 = arith.constant 0.00999999977 : f32
    %10 = vector.broadcast %cst_4 : f32 to vector<256x4xf32>
    %11 = arith.mulf %10, %7 : vector<256x4xf32>
    %12 = arith.select %9, %7, %11 : vector<256x4xi1>, vector<256x4xf32>
    %13 = arith.truncf %12 : vector<256x4xf32> to vector<256x4xbf16>
    %c0_5 = arith.constant 0 : index
    %c0_6 = arith.constant 0 : index
    %14 = vector.load %arg3[%c0_5, %c0_6] : memref<256x4xbf16, #tpu.memory_space<vmem>>, vector<256x4xbf16>
    tpu.vector_store %arg3[%c0_5, %c0_6], %13 {strides = array<i32>} : memref<256x4xbf16, #tpu.memory_space<vmem>>, vector<256x4xbf16>,
    return
  }
  func.func @transform_0(%arg0: i32) -> (i32, i32) {
    %c0_i32 = arith.constant 0 : i32
    %c0_i32_0 = arith.constant 0 : i32
    return %arg0, %c0_i32 : i32, i32
  }
  func.func @transform_1(%arg0: i32) -> (i32, i32) {
    %c0_i32 = arith.constant 0 : i32
    %c0_i32_0 = arith.constant 0 : i32
    %c0_i32_1 = arith.constant 0 : i32
    return %c0_i32, %c0_i32_0 : i32, i32
  }
  func.func @transform_2(%arg0: i32) -> (i32, i32) {
    %c0_i32 = arith.constant 0 : i32
    %c0_i32_0 = arith.constant 0 : i32
    return %arg0, %c0_i32 : i32, i32
  }
}

module attributes {stable_mosaic.version = 11 : i64} {
  func.func @_bn_add_act_kernel(%arg0: i32, %arg1: memref<256x4xbf16, #tpu.memory_space<vmem>>, %arg2: memref<2x4xf32, #tpu.memory_space<vmem>>, %arg3: memref<256x4xbf16, #tpu.memory_space<vmem>>, %arg4: memref<256x4xf32, #tpu.memory_space<vmem>>) attributes {dimension_semantics = [#tpu.dimension_semantics<parallel>], iteration_bounds = array<i64: 2>, scalar_prefetch = 0 : i64, scratch_operands = 0 : i64, tpu.core_type = #tpu.core_type<tc>, window_params = [{transform_indices = @transform_0, window_bounds = array<i64: 256, 4>}, {pipeline_mode = #tpu.pipeline_mode<synchronous>, transform_indices = @transform_1, window_bounds = array<i64: 2, 4>}, {transform_indices = @transform_2, window_bounds = array<i64: 256, 4>}, {transform_indices = @transform_3, window_bounds = array<i64: 256, 4>}]} {
    %c0 = arith.constant 0 : index
    %c0_0 = arith.constant 0 : index
    %0 = vector.load %arg1[%c0, %c0_0] : memref<256x4xbf16, #tpu.memory_space<vmem>>, vector<256x4xbf16>
    %1 = arith.extf %0 : vector<256x4xbf16> to vector<256x4xf32>
    %c0_1 = arith.constant 0 : index
    %c0_2 = arith.constant 0 : index
    %2 = vector.load %arg2[%c0_1, %c0_2] : memref<2x4xf32, #tpu.memory_space<vmem>>, vector<1x4xf32>
    %3 = vector.broadcast %2 : vector<1x4xf32> to vector<256x4xf32>
    %4 = arith.mulf %1, %3 : vector<256x4xf32>
    %c1 = arith.constant 1 : index
    %c0_3 = arith.constant 0 : index
    %5 = vector.load %arg2[%c1, %c0_3] : memref<2x4xf32, #tpu.memory_space<vmem>>, vector<1x4xf32>
    %6 = vector.broadcast %5 : vector<1x4xf32> to vector<256x4xf32>
    %7 = arith.addf %4, %6 : vector<256x4xf32>
    %c0_4 = arith.constant 0 : index
    %c0_5 = arith.constant 0 : index
    %8 = vector.load %arg3[%c0_4, %c0_5] : memref<256x4xbf16, #tpu.memory_space<vmem>>, vector<256x4xbf16>
    %9 = arith.extf %8 : vector<256x4xbf16> to vector<256x4xf32>
    %10 = arith.addf %7, %9 : vector<256x4xf32>
    %cst = arith.constant 0.000000e+00 : f32
    %11 = vector.broadcast %cst : f32 to vector<256x4xf32>
    %12 = arith.cmpf oge, %10, %11 : vector<256x4xf32>
    %cst_6 = arith.constant 0.00999999977 : f32
    %13 = vector.broadcast %cst_6 : f32 to vector<256x4xf32>
    %14 = arith.mulf %13, %10 : vector<256x4xf32>
    %15 = arith.select %12, %10, %14 : vector<256x4xi1>, vector<256x4xf32>
    %c0_7 = arith.constant 0 : index
    %c0_8 = arith.constant 0 : index
    %16 = vector.load %arg4[%c0_7, %c0_8] : memref<256x4xf32, #tpu.memory_space<vmem>>, vector<256x4xf32>
    tpu.vector_store %arg4[%c0_7, %c0_8], %15 {strides = array<i32>} : memref<256x4xf32, #tpu.memory_space<vmem>>, vector<256x4xf32>,
    return
  }
  func.func @transform_0(%arg0: i32) -> (i32, i32) {
    %c0_i32 = arith.constant 0 : i32
    %c0_i32_0 = arith.constant 0 : i32
    return %arg0, %c0_i32 : i32, i32
  }
  func.func @transform_1(%arg0: i32) -> (i32, i32) {
    %c0_i32 = arith.constant 0 : i32
    %c0_i32_0 = arith.constant 0 : i32
    %c0_i32_1 = arith.constant 0 : i32
    return %c0_i32, %c0_i32_0 : i32, i32
  }
  func.func @transform_2(%arg0: i32) -> (i32, i32) {
    %c0_i32 = arith.constant 0 : i32
    %c0_i32_0 = arith.constant 0 : i32
    return %arg0, %c0_i32 : i32, i32
  }
  func.func @transform_3(%arg0: i32) -> (i32, i32) {
    %c0_i32 = arith.constant 0 : i32
    %c0_i32_0 = arith.constant 0 : i32
    return %arg0, %c0_i32 : i32, i32
  }
}

</mosaic_0001>

<llo_original>
// kernel: _lambda_.5
$region0: #{_lambda_.5}
  #allocation0 [shape = 'u32[]', space=smem, size = 0x4, offset = 0x4, fixed_abs, tag = 'smem constant byte address 0x4 - core index']
  #allocation1 [shape = 'u32[144,128]{1,0:T(1,128)}', space=vmem, size = 0x12000, scoped, tag = 'internal scratch']
  %s0 = inlined_call_operand.vmem [shape: bf16[512,4], index: 0, kind: input, shape index: {}]
  %s1 = inlined_call_operand.vmem [shape: f32[2,4], index: 1, kind: input, shape index: {}]
  %s2 = inlined_call_operand.vmem [shape: bf16[512,4], index: 2, kind: output, shape index: {}]
  %s3 = sld [smem:[#allocation0]]
  $region41: #{_lambda_.5} parent=0
    _
  %s5 = ssub.s32 1, %s3
  %s6 = scalar_select 0, %s5, %s3
  loop: start=0, step=1, limit=4
  $region2: #{_lambda_.5} parent=0 // loop_pre_header
    _
  $region3: #{_lambda_.5} parent=0 // loop_header
    %s8 = sphi 0, %s12
    %p9 = scmp.ge.s32.totalorder %s8, 4
    %s18 = sphi 0, %s20
    %s21 = sphi 0, %s18
    %s22 = sphi 0, %s21
    %s38 = sphi 0, %s22
    %s42 = sphi 0, %s42
    %s44 = sphi 0, %s42
    %s45 = sphi 0, %s44
    %s59 = sphi 0, %s45
    %s65 = sphi 0, %s67
    %s68 = sphi 0, %s65
    %s69 = sphi 0, %s68
    %s85 = sphi 0, %s69
  $region4: #{_lambda_.5} parent=0 // loop_header_branch
    %11 = sbr.rel (%p9) target = $region8
  $region5: #{_lambda_.5} parent=0 // loop_body
    %s13 = ssub.s32 %s8, 1
    %s14 = ssub.s32 %s8, 2
    %s15 = sadd.s32 %s8, 1
    %s16 = ssub.s32 %s8, %s15
    %p17 = scmp.eq.s32.totalorder %s16, 0
    %s19 = sadd.s32 %s18, 1
    %s20 = scalar_select %p17, %s18, %s19
    %p23 = pneg %p17
    %p24 = scmp.eq.s32.totalorder %s8, 1
    %p25 = por %p23, %p24
    %p26 = scmp.ne.s32.totalorder %s18, %s21
    %p27 = scmp.eq.s32.totalorder %s8, 0
    %p28 = por %p26, %p27
    %p29 = scmp.ne.s32.totalorder %s18, %s21
    %p30 = scmp.eq.s32.totalorder %s13, 1
    %p31 = por %p29, %p30
    %p32 = scmp.ne.s32.totalorder %s21, %s22
    %p33 = scmp.eq.s32.totalorder %s13, 0
    %p34 = por %p32, %p33
    %p35 = scmp.ne.s32.totalorder %s21, %s22
    %p36 = scmp.eq.s32.totalorder %s14, 1
    %p37 = por %p35, %p36
    %p39 = scmp.ne.s32.totalorder %s22, %s38
    %p40 = scmp.eq.s32.totalorder %s14, 0
    %p41 = por %p39, %p40
    %s43 = sadd.s32 %s42, 1
    %p46 = scmp.eq.s32.totalorder %s8, 1
    %p47 = scmp.ne.s32.totalorder %s42, %s44
    %p48 = scmp.eq.s32.totalorder %s8, 0
    %p49 = por %p47, %p48
    %p50 = scmp.ne.s32.totalorder %s42, %s44
    %p51 = scmp.eq.s32.totalorder %s13, 1
    %p52 = por %p50, %p51
    %p53 = scmp.ne.s32.totalorder %s44, %s45
    %p54 = scmp.eq.s32.totalorder %s13, 0
    %p55 = por %p53, %p54
    %p56 = scmp.ne.s32.totalorder %s44, %s45
    %p57 = scmp.eq.s32.totalorder %s14, 1
    %p58 = por %p56, %p57
    %p60 = scmp.ne.s32.totalorder %s45, %s59
    %p61 = scmp.eq.s32.totalorder %s14, 0
    %p62 = por %p60, %p61
    %s63 = ssub.s32 %s8, %s15
    %p64 = scmp.eq.s32.totalorder %s63, 0
    %s66 = sadd.s32 %s65, 1
    %s67 = scalar_select %p64, %s65, %s66
    %p70 = pneg %p64
    %p71 = scmp.eq.s32.totalorder %s8, 1
    %p72 = por %p70, %p71
    %p73 = scmp.ne.s32.totalorder %s65, %s68
    %p74 = scmp.eq.s32.totalorder %s8, 0
    %p75 = por %p73, %p74
    %p76 = scmp.ne.s32.totalorder %s65, %s68
    %p77 = scmp.eq.s32.totalorder %s13, 1
    %p78 = por %p76, %p77
    %p79 = scmp.ne.s32.totalorder %s68, %s69
    %p80 = scmp.eq.s32.totalorder %s13, 0
    %p81 = por %p79, %p80
    %p82 = scmp.ne.s32.totalorder %s68, %s69
    %p83 = scmp.eq.s32.totalorder %s14, 1
    %p84 = por %p82, %p83
    %p86 = scmp.ne.s32.totalorder %s69, %s85
    %p87 = scmp.eq.s32.totalorder %s14, 0
    %p88 = por %p86, %p87
    %p89 = scmp.le.s32.totalorder 1, %s8
    %p90 = scmp.lt.s32.totalorder %s8, 3
    %p91 = pnand %p89, %p90
    %p92 = pneg %p91
    // Predicated region
    $region9: #{_lambda_.5} parent=5 // pred_check
      _
    $region10: #{_lambda_.5} parent=5 // pred_check_branch
      %94 = sbr.rel (%p91) target = $region12
    $region11: #{_lambda_.5} parent=5 // pred_region
      %s95 = ssub.s32 %s8, 1
      // Predicated region
      $region13: #{_lambda_.5} parent=11 // pred_check
        %p96 = pneg %p55
      $region14: #{_lambda_.5} parent=11 // pred_check_branch
        %98 = sbr.rel (%p96) target = $region16
      $region15: #{_lambda_.5} parent=11 // pred_region
        _
      $region16: #{_lambda_.5} parent=11 // pred_fallthru
        _
    $region12: #{_lambda_.5} parent=5 // pred_fallthru
      _
    %p99 = scmp.lt.s32.totalorder %s8, 2
    // Predicated region
    $region17: #{_lambda_.5} parent=5 // pred_check
      %p100 = pneg %p99
    $region18: #{_lambda_.5} parent=5 // pred_check_branch
      %102 = sbr.rel (%p100) target = $region20
    $region19: #{_lambda_.5} parent=5 // pred_region
      // Predicated region
      $region21: #{_lambda_.5} parent=19 // pred_check
        %p103 = pneg %p28
      $region22: #{_lambda_.5} parent=19 // pred_check_branch
        %105 = sbr.rel (%p103) target = $region24
      $region23: #{_lambda_.5} parent=19 // pred_region
        %s106 = smul.u32 32, %s8
        %p107 = scmp.lt.s32.totalorder %s106, 63
        %s108 = scalar_select %p107, %s106, 63
        %s109 = smul.addr %s108, 4
        %s110 = scalar_lea.vmem %s0, %s109
        %s111 = smul.u32 32, %s8
      $region24: #{_lambda_.5} parent=19 // pred_fallthru
        _
    $region20: #{_lambda_.5} parent=5 // pred_fallthru
      _
    %p112 = scmp.le.s32.totalorder 1, %s8
    %p113 = scmp.lt.s32.totalorder %s8, 3
    %p114 = pnand %p112, %p113
    %p115 = pneg %p114
    // Predicated region
    $region25: #{_lambda_.5} parent=5 // pred_check
      _
    $region26: #{_lambda_.5} parent=5 // pred_check_branch
      %117 = sbr.rel (%p114) target = $region28
    $region27: #{_lambda_.5} parent=5 // pred_region
      %s118 = ssub.s32 %s8, 1
      %s119 = smul.u32 32, %s13
      %p120 = scmp.lt.s32.totalorder %s119, 63
      %s121 = scalar_select %p120, %s119, 63
      %s122 = smul.addr %s121, 4
      %s123 = scalar_lea.vmem %s0, %s122
      %p124 = pneg %p34
      %p125 = pneg %p31
      %p126 = pneg %p55
      %p127 = pneg %p52
      %p128 = pneg %p81
      %p129 = pneg %p78
      %s130 = smul.u32 32, %s13
      %p131 = scmp.lt.s32.totalorder %s130, 63
      %s132 = scalar_select %p131, %s130, 63
      %s133 = smul.addr %s132, 4
      %s134 = scalar_lea.vmem %s2, %s133
      %s135 = smul.u32 32, %s13
      %p136 = scmp.lt.s32.totalorder %s135, 63
      %s137 = scalar_select %p136, %s135, 63
      %s138 = smul.addr %s137, 4
      %s139 = scalar_lea.vmem %s0, %s138
      %s140 = smul.u32 32, %s13
      %s141 = smul.u32 32, %s13
      %p142 = scmp.lt.s32.totalorder %s141, 63
      %s143 = scalar_select %p142, %s141, 63
      %s144 = smul.addr %s143, 4
      %s145 = scalar_lea.vmem %s2, %s144
      %s146 = smul.u32 32, %s13
      %v147 = vld [vmem:[%s139] sm:$0xf]
      %v148 = vld [vmem:[%s139 + $0x4] sm:$0xf]
      %v149 = vld [vmem:[%s139 + $0x8] sm:$0xf]
      %v150 = vld [vmem:[%s139 + $0xc] sm:$0xf]
      %v151 = vld [vmem:[%s139 + $0x10] sm:$0xf]
      %v152 = vld [vmem:[%s139 + $0x14] sm:$0xf]
      %v153 = vld [vmem:[%s139 + $0x18] sm:$0xf]
      %v154 = vld [vmem:[%s139 + $0x1c] sm:$0xf]
      %v155 = vld [vmem:[%s139 + $0x20] sm:$0xf]
      %v156 = vld [vmem:[%s139 + $0x24] sm:$0xf]
      %v157 = vld [vmem:[%s139 + $0x28] sm:$0xf]
      %v158 = vld [vmem:[%s139 + $0x2c] sm:$0xf]
      %v159 = vld [vmem:[%s139 + $0x30] sm:$0xf]
      %v160 = vld [vmem:[%s139 + $0x34] sm:$0xf]
      %v161 = vld [vmem:[%s139 + $0x38] sm:$0xf]
      %v162 = vld [vmem:[%s139 + $0x3c] sm:$0xf]
      %v163 = vld [vmem:[%s139 + $0x40] sm:$0xf]
      %v164 = vld [vmem:[%s139 + $0x44] sm:$0xf]
      %v165 = vld [vmem:[%s139 + $0x48] sm:$0xf]
      %v166 = vld [vmem:[%s139 + $0x4c] sm:$0xf]
      %v167 = vld [vmem:[%s139 + $0x50] sm:$0xf]
      %v168 = vld [vmem:[%s139 + $0x54] sm:$0xf]
      %v169 = vld [vmem:[%s139 + $0x58] sm:$0xf]
      %v170 = vld [vmem:[%s139 + $0x5c] sm:$0xf]
      %v171 = vld [vmem:[%s139 + $0x60] sm:$0xf]
      %v172 = vld [vmem:[%s139 + $0x64] sm:$0xf]
      %v173 = vld [vmem:[%s139 + $0x68] sm:$0xf]
      %v174 = vld [vmem:[%s139 + $0x6c] sm:$0xf]
      %v175 = vld [vmem:[%s139 + $0x70] sm:$0xf]
      %v176 = vld [vmem:[%s139 + $0x74] sm:$0xf]
      %v177 = vld [vmem:[%s139 + $0x78] sm:$0xf]
      %v178 = vld [vmem:[%s139 + $0x7c] sm:$0xf]
      %v179 = vunpack.c.l.bf16 %v147
      %v180 = vunpack.c.l.bf16 %v148
      %v181 = vunpack.c.l.bf16 %v149
      %v182 = vunpack.c.l.bf16 %v150
      %v183 = vunpack.c.l.bf16 %v151
      %v184 = vunpack.c.l.bf16 %v152
      %v185 = vunpack.c.l.bf16 %v153
      %v186 = vunpack.c.l.bf16 %v154
      %v187 = vunpack.c.l.bf16 %v155
      %v188 = vunpack.c.l.bf16 %v156
      %v189 = vunpack.c.l.bf16 %v157
      %v190 = vunpack.c.l.bf16 %v158
      %v191 = vunpack.c.l.bf16 %v159
      %v192 = vunpack.c.l.bf16 %v160
      %v193 = vunpack.c.l.bf16 %v161
      %v194 = vunpack.c.l.bf16 %v162
      %v195 = vunpack.c.l.bf16 %v163
      %v196 = vunpack.c.l.bf16 %v164
      %v197 = vunpack.c.l.bf16 %v165
      %v198 = vunpack.c.l.bf16 %v166
      %v199 = vunpack.c.l.bf16 %v167
      %v200 = vunpack.c.l.bf16 %v168
      %v201 = vunpack.c.l.bf16 %v169
      %v202 = vunpack.c.l.bf16 %v170
      %v203 = vunpack.c.l.bf16 %v171
      %v204 = vunpack.c.l.bf16 %v172
      %v205 = vunpack.c.l.bf16 %v173
      %v206 = vunpack.c.l.bf16 %v174
      %v207 = vunpack.c.l.bf16 %v175
      %v208 = vunpack.c.l.bf16 %v176
      %v209 = vunpack.c.l.bf16 %v177
      %v210 = vunpack.c.l.bf16 %v178
      %v211 = vld [vmem:[%s1] sm:$0x1]
      %v212 = vlaneseq
      %v213 = vshrl.u32 %v212, 7
      %v214 = vsub.s32 0, %v213
      %v215 = vrot.slane %v211, %v214
      %v216 = vmul.f32 %v179, %v215
      %v217 = vmul.f32 %v180, %v215
      %v218 = vmul.f32 %v181, %v215
      %v219 = vmul.f32 %v182, %v215
      %v220 = vmul.f32 %v183, %v215
      %v221 = vmul.f32 %v184, %v215
      %v222 = vmul.f32 %v185, %v215
      %v223 = vmul.f32 %v186, %v215
      %v224 = vmul.f32 %v187, %v215
      %v225 = vmul.f32 %v188, %v215
      %v226 = vmul.f32 %v189, %v215
      %v227 = vmul.f32 %v190, %v215
      %v228 = vmul.f32 %v191, %v215
      %v229 = vmul.f32 %v192, %v215
      %v230 = vmul.f32 %v193, %v215
      %v231 = vmul.f32 %v194, %v215
      %v232 = vmul.f32 %v195, %v215
      %v233 = vmul.f32 %v196, %v215
      %v234 = vmul.f32 %v197, %v215
      %v235 = vmul.f32 %v198, %v215
      %v236 = vmul.f32 %v199, %v215
      %v237 = vmul.f32 %v200, %v215
      %v238 = vmul.f32 %v201, %v215
      %v239 = vmul.f32 %v202, %v215
      %v240 = vmul.f32 %v203, %v215
      %v241 = vmul.f32 %v204, %v215
      %v242 = vmul.f32 %v205, %v215
      %v243 = vmul.f32 %v206, %v215
      %v244 = vmul.f32 %v207, %v215
      %v245 = vmul.f32 %v208, %v215
      %v246 = vmul.f32 %v209, %v215
      %v247 = vmul.f32 %v210, %v215
      %v248 = vld [vmem:[%s1 + $0x1] sm:$0x1]
      %v249 = vlaneseq
      %v250 = vshrl.u32 %v249, 7
      %v251 = vsub.s32 0, %v250
      %v252 = vrot.slane %v248, %v251
      %v253 = vadd.f32 %v216, %v252
      %v254 = vadd.f32 %v217, %v252
      %v255 = vadd.f32 %v218, %v252
      %v256 = vadd.f32 %v219, %v252
      %v257 = vadd.f32 %v220, %v252
      %v258 = vadd.f32 %v221, %v252
      %v259 = vadd.f32 %v222, %v252
      %v260 = vadd.f32 %v223, %v252
      %v261 = vadd.f32 %v224, %v252
      %v262 = vadd.f32 %v225, %v252
      %v263 = vadd.f32 %v226, %v252
      %v264 = vadd.f32 %v227, %v252
      %v265 = vadd.f32 %v228, %v252
      %v266 = vadd.f32 %v229, %v252
      %v267 = vadd.f32 %v230, %v252
      %v268 = vadd.f32 %v231, %v252
      %v269 = vadd.f32 %v232, %v252
      %v270 = vadd.f32 %v233, %v252
      %v271 = vadd.f32 %v234, %v252
      %v272 = vadd.f32 %v235, %v252
      %v273 = vadd.f32 %v236, %v252
      %v274 = vadd.f32 %v237, %v252
      %v275 = vadd.f32 %v238, %v252
      %v276 = vadd.f32 %v239, %v252
      %v277 = vadd.f32 %v240, %v252
      %v278 = vadd.f32 %v241, %v252
      %v279 = vadd.f32 %v242, %v252
      %v280 = vadd.f32 %v243, %v252
      %v281 = vadd.f32 %v244, %v252
      %v282 = vadd.f32 %v245, %v252
      %v283 = vadd.f32 %v246, %v252
      %v284 = vadd.f32 %v247, %v252
      %vm285 = vcmp.ge.f32.partialorder %v253, 0.0
      %vm286 = vcmp.ge.f32.partialorder %v254, 0.0
      %vm287 = vcmp.ge.f32.partialorder %v255, 0.0
      %vm288 = vcmp.ge.f32.partialorder %v256, 0.0
      %vm289 = vcmp.ge.f32.partialorder %v257, 0.0
      %vm290 = vcmp.ge.f32.partialorder %v258, 0.0
      %vm291 = vcmp.ge.f32.partialorder %v259, 0.0
      %vm292 = vcmp.ge.f32.partialorder %v260, 0.0
      %vm293 = vcmp.ge.f32.partialorder %v261, 0.0
      %vm294 = vcmp.ge.f32.partialorder %v262, 0.0
      %vm295 = vcmp.ge.f32.partialorder %v263, 0.0
      %vm296 = vcmp.ge.f32.partialorder %v264, 0.0
      %vm297 = vcmp.ge.f32.partialorder %v265, 0.0
      %vm298 = vcmp.ge.f32.partialorder %v266, 0.0
      %vm299 = vcmp.ge.f32.partialorder %v267, 0.0
      %vm300 = vcmp.ge.f32.partialorder %v268, 0.0
      %vm301 = vcmp.ge.f32.partialorder %v269, 0.0
      %vm302 = vcmp.ge.f32.partialorder %v270, 0.0
      %vm303 = vcmp.ge.f32.partialorder %v271, 0.0
      %vm304 = vcmp.ge.f32.partialorder %v272, 0.0
      %vm305 = vcmp.ge.f32.partialorder %v273, 0.0
      %vm306 = vcmp.ge.f32.partialorder %v274, 0.0
      %vm307 = vcmp.ge.f32.partialorder %v275, 0.0
      %vm308 = vcmp.ge.f32.partialorder %v276, 0.0
      %vm309 = vcmp.ge.f32.partialorder %v277, 0.0
      %vm310 = vcmp.ge.f32.partialorder %v278, 0.0
      %vm311 = vcmp.ge.f32.partialorder %v279, 0.0
      %vm312 = vcmp.ge.f32.partialorder %v280, 0.0
      %vm313 = vcmp.ge.f32.partialorder %v281, 0.0
      %vm314 = vcmp.ge.f32.partialorder %v282, 0.0
      %vm315 = vcmp.ge.f32.partialorder %v283, 0.0
      %vm316 = vcmp.ge.f32.partialorder %v284, 0.0
      %v317 = vmul.f32 %v253, 0.01
      %v318 = vmul.f32 %v254, 0.01
      %v319 = vmul.f32 %v255, 0.01
      %v320 = vmul.f32 %v256, 0.01
      %v321 = vmul.f32 %v257, 0.01
      %v322 = vmul.f32 %v258, 0.01
      %v323 = vmul.f32 %v259, 0.01
      %v324 = vmul.f32 %v260, 0.01
      %v325 = vmul.f32 %v261, 0.01
      %v326 = vmul.f32 %v262, 0.01
      %v327 = vmul.f32 %v263, 0.01
      %v328 = vmul.f32 %v264, 0.01
      %v329 = vmul.f32 %v265, 0.01
      %v330 = vmul.f32 %v266, 0.01
      %v331 = vmul.f32 %v267, 0.01
      %v332 = vmul.f32 %v268, 0.01
      %v333 = vmul.f32 %v269, 0.01
      %v334 = vmul.f32 %v270, 0.01
      %v335 = vmul.f32 %v271, 0.01
      %v336 = vmul.f32 %v272, 0.01
      %v337 = vmul.f32 %v273, 0.01
      %v338 = vmul.f32 %v274, 0.01
      %v339 = vmul.f32 %v275, 0.01
      %v340 = vmul.f32 %v276, 0.01
      %v341 = vmul.f32 %v277, 0.01
      %v342 = vmul.f32 %v278, 0.01
      %v343 = vmul.f32 %v279, 0.01
      %v344 = vmul.f32 %v280, 0.01
      %v345 = vmul.f32 %v281, 0.01
      %v346 = vmul.f32 %v282, 0.01
      %v347 = vmul.f32 %v283, 0.01
      %v348 = vmul.f32 %v284, 0.01
      %v349 = vsel %vm285, %v253, %v317
      %v350 = vsel %vm286, %v254, %v318
      %v351 = vsel %vm287, %v255, %v319
      %v352 = vsel %vm288, %v256, %v320
      %v353 = vsel %vm289, %v257, %v321
      %v354 = vsel %vm290, %v258, %v322
      %v355 = vsel %vm291, %v259, %v323
      %v356 = vsel %vm292, %v260, %v324
      %v357 = vsel %vm293, %v261, %v325
      %v358 = vsel %vm294, %v262, %v326
      %v359 = vsel %vm295, %v263, %v327
      %v360 = vsel %vm296, %v264, %v328
      %v361 = vsel %vm297, %v265, %v329
      %v362 = vsel %vm298, %v266, %v330
      %v363 = vsel %vm299, %v267, %v331
      %v364 = vsel %vm300, %v268, %v332
      %v365 = vsel %vm301, %v269, %v333
      %v366 = vsel %vm302, %v270, %v334
      %v367 = vsel %vm303, %v271, %v335
      %v368 = vsel %vm304, %v272, %v336
      %v369 = vsel %vm305, %v273, %v337
      %v370 = vsel %vm306, %v274, %v338
      %v371 = vsel %vm307, %v275, %v339
      %v372 = vsel %vm308, %v276, %v340
      %v373 = vsel %vm309, %v277, %v341
      %v374 = vsel %vm310, %v278, %v342
      %v375 = vsel %vm311, %v279, %v343
      %v376 = vsel %vm312, %v280, %v344
      %v377 = vsel %vm313, %v281, %v345
      %v378 = vsel %vm314, %v282, %v346
      %v379 = vsel %vm315, %v283, %v347
      %v380 = vsel %vm316, %v284, %v348
      %v381 = vpack.c.bf16 %v350, %v349
      %v382 = vpack.c.bf16 %v352, %v351
      %v383 = vpack.c.bf16 %v354, %v353
      %v384 = vpack.c.bf16 %v356, %v355
      %v385 = vpack.c.bf16 %v358, %v357
      %v386 = vpack.c.bf16 %v360, %v359
      %v387 = vpack.c.bf16 %v362, %v361
      %v388 = vpack.c.bf16 %v364, %v363
      %v389 = vpack.c.bf16 %v366, %v365
      %v390 = vpack.c.bf16 %v368, %v367
      %v391 = vpack.c.bf16 %v370, %v369
      %v392 = vpack.c.bf16 %v372, %v371
      %v393 = vpack.c.bf16 %v374, %v373
      %v394 = vpack.c.bf16 %v376, %v375
      %v395 = vpack.c.bf16 %v378, %v377
      %v396 = vpack.c.bf16 %v380, %v379
      %v413 = vunpack.c.l.b16 %v381
      %v414 = vunpack.c.h.b16 %v381
      %v415 = vunpack.c.l.b16 %v382
      %v416 = vunpack.c.h.b16 %v382
      %v417 = vunpack.c.l.b16 %v383
      %v418 = vunpack.c.h.b16 %v383
      %v419 = vunpack.c.l.b16 %v384
      %v420 = vunpack.c.h.b16 %v384
      %v421 = vunpack.c.l.b16 %v385
      %v422 = vunpack.c.h.b16 %v385
      %v423 = vunpack.c.l.b16 %v386
      %v424 = vunpack.c.h.b16 %v386
      %v425 = vunpack.c.l.b16 %v387
      %v426 = vunpack.c.h.b16 %v387
      %v427 = vunpack.c.l.b16 %v388
      %v428 = vunpack.c.h.b16 %v388
      %v429 = vunpack.c.l.b16 %v389
      %v430 = vunpack.c.h.b16 %v389
      %v431 = vunpack.c.l.b16 %v390
      %v432 = vunpack.c.h.b16 %v390
      %v433 = vunpack.c.l.b16 %v391
      %v434 = vunpack.c.h.b16 %v391
      %v435 = vunpack.c.l.b16 %v392
      %v436 = vunpack.c.h.b16 %v392
      %v437 = vunpack.c.l.b16 %v393
      %v438 = vunpack.c.h.b16 %v393
      %v439 = vunpack.c.l.b16 %v394
      %v440 = vunpack.c.h.b16 %v394
      %v441 = vunpack.c.l.b16 %v395
      %v442 = vunpack.c.h.b16 %v395
      %v443 = vunpack.c.l.b16 %v396
      %v444 = vunpack.c.h.b16 %v396
      %v445 = vpack.c.b16 %v413, %v413
      %v446 = vpack.c.b16 %v414, %v414
      %v447 = vpack.c.b16 %v415, %v415
      %v448 = vpack.c.b16 %v416, %v416
      %v449 = vpack.c.b16 %v417, %v417
      %v450 = vpack.c.b16 %v418, %v418
      %v451 = vpack.c.b16 %v419, %v419
      %v452 = vpack.c.b16 %v420, %v420
      %v453 = vpack.c.b16 %v421, %v421
      %v454 = vpack.c.b16 %v422, %v422
      %v455 = vpack.c.b16 %v423, %v423
      %v456 = vpack.c.b16 %v424, %v424
      %v457 = vpack.c.b16 %v425, %v425
      %v458 = vpack.c.b16 %v426, %v426
      %v459 = vpack.c.b16 %v427, %v427
      %v460 = vpack.c.b16 %v428, %v428
      %v461 = vpack.c.b16 %v429, %v429
      %v462 = vpack.c.b16 %v430, %v430
      %v463 = vpack.c.b16 %v431, %v431
      %v464 = vpack.c.b16 %v432, %v432
      %v465 = vpack.c.b16 %v433, %v433
      %v466 = vpack.c.b16 %v434, %v434
      %v467 = vpack.c.b16 %v435, %v435
      %v468 = vpack.c.b16 %v436, %v436
      %v469 = vpack.c.b16 %v437, %v437
      %v470 = vpack.c.b16 %v438, %v438
      %v471 = vpack.c.b16 %v439, %v439
      %v472 = vpack.c.b16 %v440, %v440
      %v473 = vpack.c.b16 %v441, %v441
      %v474 = vpack.c.b16 %v442, %v442
      %v475 = vpack.c.b16 %v443, %v443
      %v476 = vpack.c.b16 %v444, %v444
      %vm509 = vcmask 27648
      %510 = vst.msk [vmem:[%s145] sm:$0xf] %vm509, %v445
      %511 = vst.msk [vmem:[%s145 + $0x4] sm:$0xf] %vm509, %v446
      %512 = vst.msk [vmem:[%s145 + $0x8] sm:$0xf] %vm509, %v447
      %513 = vst.msk [vmem:[%s145 + $0xc] sm:$0xf] %vm509, %v448
      %514 = vst.msk [vmem:[%s145 + $0x10] sm:$0xf] %vm509, %v449
      %515 = vst.msk [vmem:[%s145 + $0x14] sm:$0xf] %vm509, %v450
      %516 = vst.msk [vmem:[%s145 + $0x18] sm:$0xf] %vm509, %v451
      %517 = vst.msk [vmem:[%s145 + $0x1c] sm:$0xf] %vm509, %v452
      %518 = vst.msk [vmem:[%s145 + $0x20] sm:$0xf] %vm509, %v453
      %519 = vst.msk [vmem:[%s145 + $0x24] sm:$0xf] %vm509, %v454
      %520 = vst.msk [vmem:[%s145 + $0x28] sm:$0xf] %vm509, %v455
      %521 = vst.msk [vmem:[%s145 + $0x2c] sm:$0xf] %vm509, %v456
      %522 = vst.msk [vmem:[%s145 + $0x30] sm:$0xf] %vm509, %v457
      %523 = vst.msk [vmem:[%s145 + $0x34] sm:$0xf] %vm509, %v458
      %524 = vst.msk [vmem:[%s145 + $0x38] sm:$0xf] %vm509, %v459
      %525 = vst.msk [vmem:[%s145 + $0x3c] sm:$0xf] %vm509, %v460
      %526 = vst.msk [vmem:[%s145 + $0x40] sm:$0xf] %vm509, %v461
      %527 = vst.msk [vmem:[%s145 + $0x44] sm:$0xf] %vm509, %v462
      %528 = vst.msk [vmem:[%s145 + $0x48] sm:$0xf] %vm509, %v463
      %529 = vst.msk [vmem:[%s145 + $0x4c] sm:$0xf] %vm509, %v464
      %530 = vst.msk [vmem:[%s145 + $0x50] sm:$0xf] %vm509, %v465
      %531 = vst.msk [vmem:[%s145 + $0x54] sm:$0xf] %vm509, %v466
      %532 = vst.msk [vmem:[%s145 + $0x58] sm:$0xf] %vm509, %v467
      %533 = vst.msk [vmem:[%s145 + $0x5c] sm:$0xf] %vm509, %v468
      %534 = vst.msk [vmem:[%s145 + $0x60] sm:$0xf] %vm509, %v469
      %535 = vst.msk [vmem:[%s145 + $0x64] sm:$0xf] %vm509, %v470
      %536 = vst.msk [vmem:[%s145 + $0x68] sm:$0xf] %vm509, %v471
      %537 = vst.msk [vmem:[%s145 + $0x6c] sm:$0xf] %vm509, %v472
      %538 = vst.msk [vmem:[%s145 + $0x70] sm:$0xf] %vm509, %v473
      %539 = vst.msk [vmem:[%s145 + $0x74] sm:$0xf] %vm509, %v474
      %540 = vst.msk [vmem:[%s145 + $0x78] sm:$0xf] %vm509, %v475
      %541 = vst.msk [vmem:[%s145 + $0x7c] sm:$0xf] %vm509, %v476
      %s542 = smul.u32 32, %s13
      %p543 = scmp.lt.s32.totalorder %s542, 63
      %s544 = scalar_select %p543, %s542, 63
      %s545 = smul.addr %s544, 4
      %s546 = scalar_lea.vmem %s2, %s545
      // Predicated region
      $region29: #{_lambda_.5} parent=27 // pred_check
        %p547 = pneg %p78
      $region30: #{_lambda_.5} parent=27 // pred_check_branch
        %549 = sbr.rel (%p547) target = $region32
      $region31: #{_lambda_.5} parent=27 // pred_region
        %s550 = smul.u32 32, %s13
      $region32: #{_lambda_.5} parent=27 // pred_fallthru
        _
    $region28: #{_lambda_.5} parent=5 // pred_fallthru
      _
    %p551 = scmp.le.s32.totalorder 2, %s8
    // Predicated region
    $region33: #{_lambda_.5} parent=5 // pred_check
      %p552 = pneg %p551
    $region34: #{_lambda_.5} parent=5 // pred_check_branch
      %554 = sbr.rel (%p552) target = $region36
    $region35: #{_lambda_.5} parent=5 // pred_region
      %s555 = ssub.s32 %s8, 2
      // Predicated region
      $region37: #{_lambda_.5} parent=35 // pred_check
        %p556 = pneg %p84
      $region38: #{_lambda_.5} parent=35 // pred_check_branch
        %558 = sbr.rel (%p556) target = $region40
      $region39: #{_lambda_.5} parent=35 // pred_region
        %s559 = smul.u32 32, %s14
        %p560 = scmp.lt.s32.totalorder %s559, 63
        %s561 = scalar_select %p560, %s559, 63
        %s562 = smul.addr %s561, 4
        %s563 = scalar_lea.vmem %s2, %s562
      $region40: #{_lambda_.5} parent=35 // pred_fallthru
        _
    $region36: #{_lambda_.5} parent=5 // pred_fallthru
      _
  $region6: #{_lambda_.5} parent=0 // loop_footer
    %s12 = sadd.s32 1, %s8
  $region7: #{_lambda_.5} parent=0 // loop_footer_branch
    %7 = sbr.rel target = $region3
  $region8: #{_lambda_.5} parent=0 // loop_exit
    _

// kernel: _lambda_.4
$region0: #{_lambda_.4}
  #allocation0 [shape = 'u32[]', space=smem, size = 0x4, offset = 0x4, fixed_abs, tag = 'smem constant byte address 0x4 - core index']
  #allocation1 [shape = 'u32[144,128]{1,0:T(1,128)}', space=vmem, size = 0x12000, scoped, tag = 'internal scratch']
  %s0 = inlined_call_operand.vmem [shape: bf16[512,36], index: 0, kind: input, shape index: {}]
  %s1 = inlined_call_operand.vmem [shape: bf16[36,4], index: 1, kind: input, shape index: {}]
  %s2 = inlined_call_operand.vmem [shape: bf16[512,4], index: 2, kind: output, shape index: {0}]
  %s3 = inlined_call_operand.vmem [shape: f32[2,2,4], index: 3, kind: output, shape index: {1}]
  %4 = xla_tuple %s2, %s3
  %s5 = sld [smem:[#allocation0]]
  $region49: #{_lambda_.4} parent=0
    _
  %s7 = ssub.s32 1, %s5
  %s8 = scalar_select 0, %s7, %s5
  loop: start=0, step=1, limit=4
  $region2: #{_lambda_.4} parent=0 // loop_pre_header
    _
  $region3: #{_lambda_.4} parent=0 // loop_header
    %s10 = sphi 0, %s14
    %p11 = scmp.ge.s32.totalorder %s10, 4
    %s20 = sphi 0, %s22
    %s23 = sphi 0, %s20
    %s24 = sphi 0, %s23
    %s40 = sphi 0, %s24
    %s44 = sphi 0, %s44
    %s46 = sphi 0, %s44
    %s47 = sphi 0, %s46
    %s61 = sphi 0, %s47
    %s67 = sphi 0, %s69
    %s70 = sphi 0, %s67
    %s71 = sphi 0, %s70
    %s87 = sphi 0, %s71
    %s93 = sphi 0, %s95
    %s96 = sphi 0, %s93
    %s97 = sphi 0, %s96
    %s113 = sphi 0, %s97
  $region4: #{_lambda_.4} parent=0 // loop_header_branch
    %13 = sbr.rel (%p11) target = $region8
  $region5: #{_lambda_.4} parent=0 // loop_body
    %s15 = ssub.s32 %s10, 1
    %s16 = ssub.s32 %s10, 2
    %s17 = sadd.s32 %s10, 1
    %s18 = ssub.s32 %s10, %s17
    %p19 = scmp.eq.s32.totalorder %s18, 0
    %s21 = sadd.s32 %s20, 1
    %s22 = scalar_select %p19, %s20, %s21
    %p25 = pneg %p19
    %p26 = scmp.eq.s32.totalorder %s10, 1
    %p27 = por %p25, %p26
    %p28 = scmp.ne.s32.totalorder %s20, %s23
    %p29 = scmp.eq.s32.totalorder %s10, 0
    %p30 = por %p28, %p29
    %p31 = scmp.ne.s32.totalorder %s20, %s23
    %p32 = scmp.eq.s32.totalorder %s15, 1
    %p33 = por %p31, %p32
    %p34 = scmp.ne.s32.totalorder %s23, %s24
    %p35 = scmp.eq.s32.totalorder %s15, 0
    %p36 = por %p34, %p35
    %p37 = scmp.ne.s32.totalorder %s23, %s24
    %p38 = scmp.eq.s32.totalorder %s16, 1
    %p39 = por %p37, %p38
    %p41 = scmp.ne.s32.totalorder %s24, %s40
    %p42 = scmp.eq.s32.totalorder %s16, 0
    %p43 = por %p41, %p42
    %s45 = sadd.s32 %s44, 1
    %p48 = scmp.eq.s32.totalorder %s10, 1
    %p49 = scmp.ne.s32.totalorder %s44, %s46
    %p50 = scmp.eq.s32.totalorder %s10, 0
    %p51 = por %p49, %p50
    %p52 = scmp.ne.s32.totalorder %s44, %s46
    %p53 = scmp.eq.s32.totalorder %s15, 1
    %p54 = por %p52, %p53
    %p55 = scmp.ne.s32.totalorder %s46, %s47
    %p56 = scmp.eq.s32.totalorder %s15, 0
    %p57 = por %p55, %p56
    %p58 = scmp.ne.s32.totalorder %s46, %s47
    %p59 = scmp.eq.s32.totalorder %s16, 1
    %p60 = por %p58, %p59
    %p62 = scmp.ne.s32.totalorder %s47, %s61
    %p63 = scmp.eq.s32.totalorder %s16, 0
    %p64 = por %p62, %p63
    %s65 = ssub.s32 %s10, %s17
    %p66 = scmp.eq.s32.totalorder %s65, 0
    %s68 = sadd.s32 %s67, 1
    %s69 = scalar_select %p66, %s67, %s68
    %p72 = pneg %p66
    %p73 = scmp.eq.s32.totalorder %s10, 1
    %p74 = por %p72, %p73
    %p75 = scmp.ne.s32.totalorder %s67, %s70
    %p76 = scmp.eq.s32.totalorder %s10, 0
    %p77 = por %p75, %p76
    %p78 = scmp.ne.s32.totalorder %s67, %s70
    %p79 = scmp.eq.s32.totalorder %s15, 1
    %p80 = por %p78, %p79
    %p81 = scmp.ne.s32.totalorder %s70, %s71
    %p82 = scmp.eq.s32.totalorder %s15, 0
    %p83 = por %p81, %p82
    %p84 = scmp.ne.s32.totalorder %s70, %s71
    %p85 = scmp.eq.s32.totalorder %s16, 1
    %p86 = por %p84, %p85
    %p88 = scmp.ne.s32.totalorder %s71, %s87
    %p89 = scmp.eq.s32.totalorder %s16, 0
    %p90 = por %p88, %p89
    %s91 = ssub.s32 %s10, %s17
    %p92 = scmp.eq.s32.totalorder %s91, 0
    %s94 = sadd.s32 %s93, 1
    %s95 = scalar_select %p92, %s93, %s94
    %p98 = pneg %p92
    %p99 = scmp.eq.s32.totalorder %s10, 1
    %p100 = por %p98, %p99
    %p101 = scmp.ne.s32.totalorder %s93, %s96
    %p102 = scmp.eq.s32.totalorder %s10, 0
    %p103 = por %p101, %p102
    %p104 = scmp.ne.s32.totalorder %s93, %s96
    %p105 = scmp.eq.s32.totalorder %s15, 1
    %p106 = por %p104, %p105
    %p107 = scmp.ne.s32.totalorder %s96, %s97
    %p108 = scmp.eq.s32.totalorder %s15, 0
    %p109 = por %p107, %p108
    %p110 = scmp.ne.s32.totalorder %s96, %s97
    %p111 = scmp.eq.s32.totalorder %s16, 1
    %p112 = por %p110, %p111
    %p114 = scmp.ne.s32.totalorder %s97, %s113
    %p115 = scmp.eq.s32.totalorder %s16, 0
    %p116 = por %p114, %p115
    %p117 = scmp.le.s32.totalorder 1, %s10
    %p118 = scmp.lt.s32.totalorder %s10, 3
    %p119 = pnand %p117, %p118
    %p120 = pneg %p119
    // Predicated region
    $region9: #{_lambda_.4} parent=5 // pred_check
      _
    $region10: #{_lambda_.4} parent=5 // pred_check_branch
      %122 = sbr.rel (%p119) target = $region12
    $region11: #{_lambda_.4} parent=5 // pred_region
      %s123 = ssub.s32 %s10, 1
      // Predicated region
      $region13: #{_lambda_.4} parent=11 // pred_check
        %p124 = pneg %p57
      $region14: #{_lambda_.4} parent=11 // pred_check_branch
        %126 = sbr.rel (%p124) target = $region16
      $region15: #{_lambda_.4} parent=11 // pred_region
        _
      $region16: #{_lambda_.4} parent=11 // pred_fallthru
        _
    $region12: #{_lambda_.4} parent=5 // pred_fallthru
      _
    %p127 = scmp.lt.s32.totalorder %s10, 2
    // Predicated region
    $region17: #{_lambda_.4} parent=5 // pred_check
      %p128 = pneg %p127
    $region18: #{_lambda_.4} parent=5 // pred_check_branch
      %130 = sbr.rel (%p128) target = $region20
    $region19: #{_lambda_.4} parent=5 // pred_region
      // Predicated region
      $region21: #{_lambda_.4} parent=19 // pred_check
        %p131 = pneg %p30
      $region22: #{_lambda_.4} parent=19 // pred_check_branch
        %133 = sbr.rel (%p131) target = $region24
      $region23: #{_lambda_.4} parent=19 // pred_region
        %s134 = smul.u32 32, %s10
        %p135 = scmp.lt.s32.totalorder %s134, 63
        %s136 = scalar_select %p135, %s134, 63
        %s137 = smul.addr %s136, 4
        %s138 = scalar_lea.vmem %s0, %s137
        %s139 = smul.u32 32, %s10
      $region24: #{_lambda_.4} parent=19 // pred_fallthru
        _
    $region20: #{_lambda_.4} parent=5 // pred_fallthru
      _
    %p140 = scmp.le.s32.totalorder 1, %s10
    %p141 = scmp.lt.s32.totalorder %s10, 3
    %p142 = pnand %p140, %p141
    %p143 = pneg %p142
    // Predicated region
    $region25: #{_lambda_.4} parent=5 // pred_check
      _
    $region26: #{_lambda_.4} parent=5 // pred_check_branch
      %145 = sbr.rel (%p142) target = $region28
    $region27: #{_lambda_.4} parent=5 // pred_region
      %s146 = ssub.s32 %s10, 1
      %s147 = smul.u32 32, %s15
      %p148 = scmp.lt.s32.totalorder %s147, 63
      %s149 = scalar_select %p148, %s147, 63
      %s150 = smul.addr %s149, 4
      %s151 = scalar_lea.vmem %s0, %s150
      %p152 = pneg %p36
      %p153 = pneg %p33
      %p154 = pneg %p57
      %p155 = pneg %p54
      %p156 = pneg %p83
      %p157 = pneg %p80
      %s158 = smul.u32 32, %s15
      %p159 = scmp.lt.s32.totalorder %s158, 63
      %s160 = scalar_select %p159, %s158, 63
      %s161 = smul.addr %s160, 4
      %s162 = scalar_lea.vmem %s2, %s161
      %p163 = pneg %p109
      %p164 = pneg %p106
      %p165 = scmp.lt.s32.totalorder %s15, 1
      %s166 = scalar_select %p165, %s15, 1
      %s167 = smul.addr %s166, 2
      %s168 = scalar_lea.vmem %s3, %s167
      %s169 = smul.u32 32, %s15
      %p170 = scmp.lt.s32.totalorder %s169, 63
      %s171 = scalar_select %p170, %s169, 63
      %s172 = smul.addr %s171, 4
      %s173 = scalar_lea.vmem %s0, %s172
      %s174 = smul.u32 32, %s15
      %s175 = smul.u32 32, %s15
      %p176 = scmp.lt.s32.totalorder %s175, 63
      %s177 = scalar_select %p176, %s175, 63
      %s178 = smul.addr %s177, 4
      %s179 = scalar_lea.vmem %s2, %s178
      %s180 = smul.u32 32, %s15
      %p181 = scmp.lt.s32.totalorder %s15, 1
      %s182 = scalar_select %p181, %s15, 1
      %s183 = smul.addr %s182, 2
      %s184 = scalar_lea.vmem %s3, %s183
      %v186 = vld [vmem:[%s173] sm:$0xf]
      %v187 = vld [vmem:[%s173 + $0x4] sm:$0xf]
      %v188 = vld [vmem:[%s173 + $0x8] sm:$0xf]
      %v189 = vld [vmem:[%s173 + $0xc] sm:$0xf]
      %v190 = vld [vmem:[%s173 + $0x10] sm:$0xf]
      %v191 = vld [vmem:[%s173 + $0x14] sm:$0xf]
      %v192 = vld [vmem:[%s173 + $0x18] sm:$0xf]
      %v193 = vld [vmem:[%s173 + $0x1c] sm:$0xf]
      %v194 = vld [vmem:[%s173 + $0x20] sm:$0xf]
      %v195 = vld [vmem:[%s173 + $0x24] sm:$0xf]
      %v196 = vld [vmem:[%s173 + $0x28] sm:$0xf]
      %v197 = vld [vmem:[%s173 + $0x2c] sm:$0xf]
      %v198 = vld [vmem:[%s173 + $0x30] sm:$0xf]
      %v199 = vld [vmem:[%s173 + $0x34] sm:$0xf]
      %v200 = vld [vmem:[%s173 + $0x38] sm:$0xf]
      %v201 = vld [vmem:[%s173 + $0x3c] sm:$0xf]
      %v202 = vld [vmem:[%s173 + $0x40] sm:$0xf]
      %v203 = vld [vmem:[%s173 + $0x44] sm:$0xf]
      %v204 = vld [vmem:[%s173 + $0x48] sm:$0xf]
      %v205 = vld [vmem:[%s173 + $0x4c] sm:$0xf]
      %v206 = vld [vmem:[%s173 + $0x50] sm:$0xf]
      %v207 = vld [vmem:[%s173 + $0x54] sm:$0xf]
      %v208 = vld [vmem:[%s173 + $0x58] sm:$0xf]
      %v209 = vld [vmem:[%s173 + $0x5c] sm:$0xf]
      %v210 = vld [vmem:[%s173 + $0x60] sm:$0xf]
      %v211 = vld [vmem:[%s173 + $0x64] sm:$0xf]
      %v212 = vld [vmem:[%s173 + $0x68] sm:$0xf]
      %v213 = vld [vmem:[%s173 + $0x6c] sm:$0xf]
      %v214 = vld [vmem:[%s173 + $0x70] sm:$0xf]
      %v215 = vld [vmem:[%s173 + $0x74] sm:$0xf]
      %v216 = vld [vmem:[%s173 + $0x78] sm:$0xf]
      %v217 = vld [vmem:[%s173 + $0x7c] sm:$0xf]
      %v218 = vld [vmem:[%s1] sm:$0xf]
      %v219 = vld [vmem:[%s1 + $0x4] sm:$0xf]
      %v220 = vld [vmem:[%s1 + $0x8] sm:$0xf]
      %v221 = vld [vmem:[%s1 + $0xc] sm:$0xf]
      %v222 = vld [vmem:[%s1 + $0x10] sm:$0x3]
      %v255 = vunpack.c.l.b16 %v186
      %v256 = vunpack.c.l.b16 %v187
      %v257 = vunpack.c.l.b16 %v188
      %v258 = vunpack.c.l.b16 %v189
      %v259 = vunpack.c.l.b16 %v190
      %v260 = vunpack.c.l.b16 %v191
      %v261 = vunpack.c.l.b16 %v192
      %v262 = vunpack.c.l.b16 %v193
      %v263 = vunpack.c.l.b16 %v194
      %v264 = vunpack.c.l.b16 %v195
      %v265 = vunpack.c.l.b16 %v196
      %v266 = vunpack.c.l.b16 %v197
      %v267 = vunpack.c.l.b16 %v198
      %v268 = vunpack.c.l.b16 %v199
      %v269 = vunpack.c.l.b16 %v200
      %v270 = vunpack.c.l.b16 %v201
      %v271 = vunpack.c.l.b16 %v202
      %v272 = vunpack.c.l.b16 %v203
      %v273 = vunpack.c.l.b16 %v204
      %v274 = vunpack.c.l.b16 %v205
      %v275 = vunpack.c.l.b16 %v206
      %v276 = vunpack.c.l.b16 %v207
      %v277 = vunpack.c.l.b16 %v208
      %v278 = vunpack.c.l.b16 %v209
      %v279 = vunpack.c.l.b16 %v210
      %v280 = vunpack.c.l.b16 %v211
      %v281 = vunpack.c.l.b16 %v212
      %v282 = vunpack.c.l.b16 %v213
      %v283 = vunpack.c.l.b16 %v214
      %v284 = vunpack.c.l.b16 %v215
      %v285 = vunpack.c.l.b16 %v216
      %v286 = vunpack.c.l.b16 %v217
      %v287 = vpack.c.b16 %v256, %v255
      %v288 = vpack.c.b16 %v258, %v257
      %v289 = vpack.c.b16 %v260, %v259
      %v290 = vpack.c.b16 %v262, %v261
      %v291 = vpack.c.b16 %v264, %v263
      %v292 = vpack.c.b16 %v266, %v265
      %v293 = vpack.c.b16 %v268, %v267
      %v294 = vpack.c.b16 %v270, %v269
      %v295 = vpack.c.b16 %v272, %v271
      %v296 = vpack.c.b16 %v274, %v273
      %v297 = vpack.c.b16 %v276, %v275
      %v298 = vpack.c.b16 %v278, %v277
      %v299 = vpack.c.b16 %v280, %v279
      %v300 = vpack.c.b16 %v282, %v281
      %v301 = vpack.c.b16 %v284, %v283
      %v302 = vpack.c.b16 %v286, %v285
      %v308 = vunpack.c.l.b16 %v218
      %v309 = vunpack.c.l.b16 %v219
      %v310 = vunpack.c.l.b16 %v220
      %v311 = vunpack.c.l.b16 %v221
      %v312 = vunpack.c.l.b16 %v222
      %v313 = vpack.c.b16 %v309, %v308
      %v314 = vpack.c.b16 %v311, %v310
      %v315 = vpack.c.b16 %v312, %v312
      %vm318 = vcmask 293888
      %v320 = vsel %vm318, %v287, 0
      %v323 = vsel %vm318, %v288, 0
      %v326 = vsel %vm318, %v289, 0
      %v329 = vsel %vm318, %v290, 0
      %v332 = vsel %vm318, %v291, 0
      %v335 = vsel %vm318, %v292, 0
      %v338 = vsel %vm318, %v293, 0
      %v341 = vsel %vm318, %v294, 0
      %v344 = vsel %vm318, %v295, 0
      %v347 = vsel %vm318, %v296, 0
      %v350 = vsel %vm318, %v297, 0
      %v353 = vsel %vm318, %v298, 0
      %v356 = vsel %vm318, %v299, 0
      %v359 = vsel %vm318, %v300, 0
      %v362 = vsel %vm318, %v301, 0
      %v365 = vsel %vm318, %v302, 0
      %vm367 = vcmask 1041408
      %v369 = vsel %vm367, %v315, 0
      %371 = vmatprep.subr.bf16.mxu0 0
      %372 = vmatpush1.bf16.msra.mxu0 %v313
      %373 = vmatprep.subr.bf16.mxu0 0
      %374 = vmatpush1.bf16.msra.mxu0 %v314
      %375 = vmatprep.subr.bf16.mxu0 0
      %376 = vmatpush1.bf16.msra.mxu0 %v369
      %377 = vmatprep.subr.bf16.mxu0 0
      %378 = vmatpush1.bf16.msra.mxu0 0
      %379 = vmatprep.subr.bf16.mxu0 0
      %380 = vmatpush1.bf16.msra.mxu0 0
      %381 = vmatprep.subr.bf16.mxu0 0
      %382 = vmatpush1.bf16.msra.mxu0 0
      %383 = vmatprep.subr.bf16.mxu0 0
      %384 = vmatpush1.bf16.msra.mxu0 0
      %385 = vmatprep.subr.bf16.mxu0 0
      %386 = vmatpush1.bf16.msra.mxu0 0
      %387 = vmatprep.subr.bf16.mxu0 0
      %388 = vmatpush1.bf16.msra.mxu0 0
      %389 = vmatprep.subr.bf16.mxu0 0
      %390 = vmatpush1.bf16.msra.mxu0 0
      %391 = vmatprep.subr.bf16.mxu0 0
      %392 = vmatpush1.bf16.msra.mxu0 0
      %393 = vmatprep.subr.bf16.mxu0 0
      %394 = vmatpush1.bf16.msra.mxu0 0
      %395 = vmatprep.subr.bf16.mxu0 0
      %396 = vmatpush1.bf16.msra.mxu0 0
      %397 = vmatprep.subr.bf16.mxu0 0
      %398 = vmatpush1.bf16.msra.mxu0 0
      %399 = vmatprep.subr.bf16.mxu0 0
      %400 = vmatpush1.bf16.msra.mxu0 0
      %401 = vmatprep.subr.bf16.mxu0 0
      %402 = vmatpush1.bf16.msra.mxu0 0
      %403 = vmatprep.mubr.bf16.mxu0 0
      %404 = vmatmul.mubr.bf16.gmra.mrb[0].mxu0 %v320
      %v405 = vpop.f32.mrb[0].mxu0
      %v406 = vadd.f32 0.0, %v405
      %v407 = vpop.f32.mrb[0].mxu0
      %v408 = vpop.f32.mrb[0].mxu0
      %v409 = vadd.f32 0.0, %v408
      %v410 = vpop.f32.mrb[0].mxu0
      %411 = vmatprep.mubr.bf16.mxu0 0
      %412 = vmatmul.mubr.bf16.gmra.mrb[0].mxu0 %v323
      %v413 = vpop.f32.mrb[0].mxu0
      %v414 = vadd.f32 0.0, %v413
      %v415 = vpop.f32.mrb[0].mxu0
      %v416 = vpop.f32.mrb[0].mxu0
      %v417 = vadd.f32 0.0, %v416
      %v418 = vpop.f32.mrb[0].mxu0
      %419 = vmatprep.mubr.bf16.mxu0 0
      %420 = vmatmul.mubr.bf16.gmra.mrb[0].mxu0 %v326
      %v421 = vpop.f32.mrb[0].mxu0
      %v422 = vadd.f32 0.0, %v421
      %v423 = vpop.f32.mrb[0].mxu0
      %v424 = vpop.f32.mrb[0].mxu0
      %v425 = vadd.f32 0.0, %v424
      %v426 = vpop.f32.mrb[0].mxu0
      %427 = vmatprep.mubr.bf16.mxu0 0
      %428 = vmatmul.mubr.bf16.gmra.mrb[0].mxu0 %v329
      %v429 = vpop.f32.mrb[0].mxu0
      %v430 = vadd.f32 0.0, %v429
      %v431 = vpop.f32.mrb[0].mxu0
      %v432 = vpop.f32.mrb[0].mxu0
      %v433 = vadd.f32 0.0, %v432
      %v434 = vpop.f32.mrb[0].mxu0
      %435 = vmatprep.mubr.bf16.mxu0 0
      %436 = vmatmul.mubr.bf16.gmra.mrb[0].mxu0 %v332
      %v437 = vpop.f32.mrb[0].mxu0
      %v438 = vadd.f32 0.0, %v437
      %v439 = vpop.f32.mrb[0].mxu0
      %v440 = vpop.f32.mrb[0].mxu0
      %v441 = vadd.f32 0.0, %v440
      %v442 = vpop.f32.mrb[0].mxu0
      %443 = vmatprep.mubr.bf16.mxu0 0
      %444 = vmatmul.mubr.bf16.gmra.mrb[0].mxu0 %v335
      %v445 = vpop.f32.mrb[0].mxu0
      %v446 = vadd.f32 0.0, %v445
      %v447 = vpop.f32.mrb[0].mxu0
      %v448 = vpop.f32.mrb[0].mxu0
      %v449 = vadd.f32 0.0, %v448
      %v450 = vpop.f32.mrb[0].mxu0
      %451 = vmatprep.mubr.bf16.mxu0 0
      %452 = vmatmul.mubr.bf16.gmra.mrb[0].mxu0 %v338
      %v453 = vpop.f32.mrb[0].mxu0
      %v454 = vadd.f32 0.0, %v453
      %v455 = vpop.f32.mrb[0].mxu0
      %v456 = vpop.f32.mrb[0].mxu0
      %v457 = vadd.f32 0.0, %v456
      %v458 = vpop.f32.mrb[0].mxu0
      %459 = vmatprep.mubr.bf16.mxu0 0
      %460 = vmatmul.mubr.bf16.gmra.mrb[0].mxu0 %v341
      %v461 = vpop.f32.mrb[0].mxu0
      %v462 = vadd.f32 0.0, %v461
      %v463 = vpop.f32.mrb[0].mxu0
      %v464 = vpop.f32.mrb[0].mxu0
      %v465 = vadd.f32 0.0, %v464
      %v466 = vpop.f32.mrb[0].mxu0
      %467 = vmatprep.mubr.bf16.mxu0 0
      %468 = vmatmul.mubr.bf16.gmra.mrb[0].mxu0 %v344
      %v469 = vpop.f32.mrb[0].mxu0
      %v470 = vadd.f32 0.0, %v469
      %v471 = vpop.f32.mrb[0].mxu0
      %v472 = vpop.f32.mrb[0].mxu0
      %v473 = vadd.f32 0.0, %v472
      %v474 = vpop.f32.mrb[0].mxu0
      %475 = vmatprep.mubr.bf16.mxu0 0
      %476 = vmatmul.mubr.bf16.gmra.mrb[0].mxu0 %v347
      %v477 = vpop.f32.mrb[0].mxu0
      %v478 = vadd.f32 0.0, %v477
      %v479 = vpop.f32.mrb[0].mxu0
      %v480 = vpop.f32.mrb[0].mxu0
      %v481 = vadd.f32 0.0, %v480
      %v482 = vpop.f32.mrb[0].mxu0
      %483 = vmatprep.mubr.bf16.mxu0 0
      %484 = vmatmul.mubr.bf16.gmra.mrb[0].mxu0 %v350
      %v485 = vpop.f32.mrb[0].mxu0
      %v486 = vadd.f32 0.0, %v485
      %v487 = vpop.f32.mrb[0].mxu0
      %v488 = vpop.f32.mrb[0].mxu0
      %v489 = vadd.f32 0.0, %v488
      %v490 = vpop.f32.mrb[0].mxu0
      %491 = vmatprep.mubr.bf16.mxu0 0
      %492 = vmatmul.mubr.bf16.gmra.mrb[0].mxu0 %v353
      %v493 = vpop.f32.mrb[0].mxu0
      %v494 = vadd.f32 0.0, %v493
      %v495 = vpop.f32.mrb[0].mxu0
      %v496 = vpop.f32.mrb[0].mxu0
      %v497 = vadd.f32 0.0, %v496
      %v498 = vpop.f32.mrb[0].mxu0
      %499 = vmatprep.mubr.bf16.mxu0 0
      %500 = vmatmul.mubr.bf16.gmra.mrb[0].mxu0 %v356
      %v501 = vpop.f32.mrb[0].mxu0
      %v502 = vadd.f32 0.0, %v501
      %v503 = vpop.f32.mrb[0].mxu0
      %v504 = vpop.f32.mrb[0].mxu0
      %v505 = vadd.f32 0.0, %v504
      %v506 = vpop.f32.mrb[0].mxu0
      %507 = vmatprep.mubr.bf16.mxu0 0
      %508 = vmatmul.mubr.bf16.gmra.mrb[0].mxu0 %v359
      %v509 = vpop.f32.mrb[0].mxu0
      %v510 = vadd.f32 0.0, %v509
      %v511 = vpop.f32.mrb[0].mxu0
      %v512 = vpop.f32.mrb[0].mxu0
      %v513 = vadd.f32 0.0, %v512
      %v514 = vpop.f32.mrb[0].mxu0
      %515 = vmatprep.mubr.bf16.mxu0 0
      %516 = vmatmul.mubr.bf16.gmra.mrb[0].mxu0 %v362
      %v517 = vpop.f32.mrb[0].mxu0
      %v518 = vadd.f32 0.0, %v517
      %v519 = vpop.f32.mrb[0].mxu0
      %v520 = vpop.f32.mrb[0].mxu0
      %v521 = vadd.f32 0.0, %v520
      %v522 = vpop.f32.mrb[0].mxu0
      %523 = vmatprep.mubr.bf16.mxu0 0
      %524 = vmatmul.mubr.bf16.gmra.mrb[0].mxu0 %v365
      %v525 = vpop.f32.mrb[0].mxu0
      %v526 = vadd.f32 0.0, %v525
      %v527 = vpop.f32.mrb[0].mxu0
      %v528 = vpop.f32.mrb[0].mxu0
      %v529 = vadd.f32 0.0, %v528
      %v530 = vpop.f32.mrb[0].mxu0
      %531 = vdwg.mxu0
      %v532 = vpack.c.bf16 %v409, %v406
      %v533 = vpack.c.bf16 %v417, %v414
      %v534 = vpack.c.bf16 %v425, %v422
      %v535 = vpack.c.bf16 %v433, %v430
      %v536 = vpack.c.bf16 %v441, %v438
      %v537 = vpack.c.bf16 %v449, %v446
      %v538 = vpack.c.bf16 %v457, %v454
      %v539 = vpack.c.bf16 %v465, %v462
      %v540 = vpack.c.bf16 %v473, %v470
      %v541 = vpack.c.bf16 %v481, %v478
      %v542 = vpack.c.bf16 %v489, %v486
      %v543 = vpack.c.bf16 %v497, %v494
      %v544 = vpack.c.bf16 %v505, %v502
      %v545 = vpack.c.bf16 %v513, %v510
      %v546 = vpack.c.bf16 %v521, %v518
      %v547 = vpack.c.bf16 %v529, %v526
      %v564 = vunpack.c.l.b16 %v532
      %v565 = vunpack.c.h.b16 %v532
      %v566 = vunpack.c.l.b16 %v533
      %v567 = vunpack.c.h.b16 %v533
      %v568 = vunpack.c.l.b16 %v534
      %v569 = vunpack.c.h.b16 %v534
      %v570 = vunpack.c.l.b16 %v535
      %v571 = vunpack.c.h.b16 %v535
      %v572 = vunpack.c.l.b16 %v536
      %v573 = vunpack.c.h.b16 %v536
      %v574 = vunpack.c.l.b16 %v537
      %v575 = vunpack.c.h.b16 %v537
      %v576 = vunpack.c.l.b16 %v538
      %v577 = vunpack.c.h.b16 %v538
      %v578 = vunpack.c.l.b16 %v539
      %v579 = vunpack.c.h.b16 %v539
      %v580 = vunpack.c.l.b16 %v540
      %v581 = vunpack.c.h.b16 %v540
      %v582 = vunpack.c.l.b16 %v541
      %v583 = vunpack.c.h.b16 %v541
      %v584 = vunpack.c.l.b16 %v542
      %v585 = vunpack.c.h.b16 %v542
      %v586 = vunpack.c.l.b16 %v543
      %v587 = vunpack.c.h.b16 %v543
      %v588 = vunpack.c.l.b16 %v544
      %v589 = vunpack.c.h.b16 %v544
      %v590 = vunpack.c.l.b16 %v545
      %v591 = vunpack.c.h.b16 %v545
      %v592 = vunpack.c.l.b16 %v546
      %v593 = vunpack.c.h.b16 %v546
      %v594 = vunpack.c.l.b16 %v547
      %v595 = vunpack.c.h.b16 %v547
      %v596 = vpack.c.b16 %v564, %v564
      %v597 = vpack.c.b16 %v565, %v565
      %v598 = vpack.c.b16 %v566, %v566
      %v599 = vpack.c.b16 %v567, %v567
      %v600 = vpack.c.b16 %v568, %v568
      %v601 = vpack.c.b16 %v569, %v569
      %v602 = vpack.c.b16 %v570, %v570
      %v603 = vpack.c.b16 %v571, %v571
      %v604 = vpack.c.b16 %v572, %v572
      %v605 = vpack.c.b16 %v573, %v573
      %v606 = vpack.c.b16 %v574, %v574
      %v607 = vpack.c.b16 %v575, %v575
      %v608 = vpack.c.b16 %v576, %v576
      %v609 = vpack.c.b16 %v577, %v577
      %v610 = vpack.c.b16 %v578, %v578
      %v611 = vpack.c.b16 %v579, %v579
      %v612 = vpack.c.b16 %v580, %v580
      %v613 = vpack.c.b16 %v581, %v581
      %v614 = vpack.c.b16 %v582, %v582
      %v615 = vpack.c.b16 %v583, %v583
      %v616 = vpack.c.b16 %v584, %v584
      %v617 = vpack.c.b16 %v585, %v585
      %v618 = vpack.c.b16 %v586, %v586
      %v619 = vpack.c.b16 %v587, %v587
      %v620 = vpack.c.b16 %v588, %v588
      %v621 = vpack.c.b16 %v589, %v589
      %v622 = vpack.c.b16 %v590, %v590
      %v623 = vpack.c.b16 %v591, %v591
      %v624 = vpack.c.b16 %v592, %v592
      %v625 = vpack.c.b16 %v593, %v593
      %v626 = vpack.c.b16 %v594, %v594
      %v627 = vpack.c.b16 %v595, %v595
      %vm660 = vcmask 27648
      %661 = vst.msk [vmem:[%s179] sm:$0xf] %vm660, %v596
      %662 = vst.msk [vmem:[%s179 + $0x4] sm:$0xf] %vm660, %v597
      %663 = vst.msk [vmem:[%s179 + $0x8] sm:$0xf] %vm660, %v598
      %664 = vst.msk [vmem:[%s179 + $0xc] sm:$0xf] %vm660, %v599
      %665 = vst.msk [vmem:[%s179 + $0x10] sm:$0xf] %vm660, %v600
      %666 = vst.msk [vmem:[%s179 + $0x14] sm:$0xf] %vm660, %v601
      %667 = vst.msk [vmem:[%s179 + $0x18] sm:$0xf] %vm660, %v602
      %668 = vst.msk [vmem:[%s179 + $0x1c] sm:$0xf] %vm660, %v603
      %669 = vst.msk [vmem:[%s179 + $0x20] sm:$0xf] %vm660, %v604
      %670 = vst.msk [vmem:[%s179 + $0x24] sm:$0xf] %vm660, %v605
      %671 = vst.msk [vmem:[%s179 + $0x28] sm:$0xf] %vm660, %v606
      %672 = vst.msk [vmem:[%s179 + $0x2c] sm:$0xf] %vm660, %v607
      %673 = vst.msk [vmem:[%s179 + $0x30] sm:$0xf] %vm660, %v608
      %674 = vst.msk [vmem:[%s179 + $0x34] sm:$0xf] %vm660, %v609
      %675 = vst.msk [vmem:[%s179 + $0x38] sm:$0xf] %vm660, %v610
      %676 = vst.msk [vmem:[%s179 + $0x3c] sm:$0xf] %vm660, %v611
      %677 = vst.msk [vmem:[%s179 + $0x40] sm:$0xf] %vm660, %v612
      %678 = vst.msk [vmem:[%s179 + $0x44] sm:$0xf] %vm660, %v613
      %679 = vst.msk [vmem:[%s179 + $0x48] sm:$0xf] %vm660, %v614
      %680 = vst.msk [vmem:[%s179 + $0x4c] sm:$0xf] %vm660, %v615
      %681 = vst.msk [vmem:[%s179 + $0x50] sm:$0xf] %vm660, %v616
      %682 = vst.msk [vmem:[%s179 + $0x54] sm:$0xf] %vm660, %v617
      %683 = vst.msk [vmem:[%s179 + $0x58] sm:$0xf] %vm660, %v618
      %684 = vst.msk [vmem:[%s179 + $0x5c] sm:$0xf] %vm660, %v619
      %685 = vst.msk [vmem:[%s179 + $0x60] sm:$0xf] %vm660, %v620
      %686 = vst.msk [vmem:[%s179 + $0x64] sm:$0xf] %vm660, %v621
      %687 = vst.msk [vmem:[%s179 + $0x68] sm:$0xf] %vm660, %v622
      %688 = vst.msk [vmem:[%s179 + $0x6c] sm:$0xf] %vm660, %v623
      %689 = vst.msk [vmem:[%s179 + $0x70] sm:$0xf] %vm660, %v624
      %690 = vst.msk [vmem:[%s179 + $0x74] sm:$0xf] %vm660, %v625
      %691 = vst.msk [vmem:[%s179 + $0x78] sm:$0xf] %vm660, %v626
      %692 = vst.msk [vmem:[%s179 + $0x7c] sm:$0xf] %vm660, %v627
      %vm693 = vcmask 31744
      %v694 = vsel %vm693, %v406, 0.0
      %v695 = vsel %vm693, %v409, 0.0
      %v696 = vadd.f32 %v694, %v695
      %v697 = vsel %vm693, %v414, 0.0
      %v698 = vadd.f32 %v696, %v697
      %v699 = vsel %vm693, %v417, 0.0
      %v700 = vadd.f32 %v698, %v699
      %v701 = vsel %vm693, %v422, 0.0
      %v702 = vadd.f32 %v700, %v701
      %v703 = vsel %vm693, %v425, 0.0
      %v704 = vadd.f32 %v702, %v703
      %v705 = vsel %vm693, %v430, 0.0
      %v706 = vadd.f32 %v704, %v705
      %v707 = vsel %vm693, %v433, 0.0
      %v708 = vadd.f32 %v706, %v707
      %v709 = vsel %vm693, %v438, 0.0
      %v710 = vadd.f32 %v708, %v709
      %v711 = vsel %vm693, %v441, 0.0
      %v712 = vadd.f32 %v710, %v711
      %v713 = vsel %vm693, %v446, 0.0
      %v714 = vadd.f32 %v712, %v713
      %v715 = vsel %vm693, %v449, 0.0
      %v716 = vadd.f32 %v714, %v715
      %v717 = vsel %vm693, %v454, 0.0
      %v718 = vadd.f32 %v716, %v717
      %v719 = vsel %vm693, %v457, 0.0
      %v720 = vadd.f32 %v718, %v719
      %v721 = vsel %vm693, %v462, 0.0
      %v722 = vadd.f32 %v720, %v721
      %v723 = vsel %vm693, %v465, 0.0
      %v724 = vadd.f32 %v722, %v723
      %v725 = vsel %vm693, %v470, 0.0
      %v726 = vadd.f32 %v724, %v725
      %v727 = vsel %vm693, %v473, 0.0
      %v728 = vadd.f32 %v726, %v727
      %v729 = vsel %vm693, %v478, 0.0
      %v730 = vadd.f32 %v728, %v729
      %v731 = vsel %vm693, %v481, 0.0
      %v732 = vadd.f32 %v730, %v731
      %v733 = vsel %vm693, %v486, 0.0
      %v734 = vadd.f32 %v732, %v733
      %v735 = vsel %vm693, %v489, 0.0
      %v736 = vadd.f32 %v734, %v735
      %v737 = vsel %vm693, %v494, 0.0
      %v738 = vadd.f32 %v736, %v737
      %v739 = vsel %vm693, %v497, 0.0
      %v740 = vadd.f32 %v738, %v739
      %v741 = vsel %vm693, %v502, 0.0
      %v742 = vadd.f32 %v740, %v741
      %v743 = vsel %vm693, %v505, 0.0
      %v744 = vadd.f32 %v742, %v743
      %v745 = vsel %vm693, %v510, 0.0
      %v746 = vadd.f32 %v744, %v745
      %v747 = vsel %vm693, %v513, 0.0
      %v748 = vadd.f32 %v746, %v747
      %v749 = vsel %vm693, %v518, 0.0
      %v750 = vadd.f32 %v748, %v749
      %v751 = vsel %vm693, %v521, 0.0
      %v752 = vadd.f32 %v750, %v751
      %v753 = vsel %vm693, %v526, 0.0
      %v754 = vadd.f32 %v752, %v753
      %v755 = vsel %vm693, %v529, 0.0
      %v756 = vadd.f32 %v754, %v755
      %v757 = vrot.slane %v756, 4
      %v758 = vadd.f32 %v756, %v757
      %v759 = vrot.slane %v758, 2
      %v760 = vadd.f32 %v758, %v759
      %v761 = vrot.slane %v760, 1
      %v762 = vadd.f32 %v760, %v761
      %vm763 = vcmask 24576
      %764 = vst.msk [vmem:[%s184] sm:$0x1] %vm763, %v762
      %v765 = vmul.f32 %v406, %v406
      %v766 = vmul.f32 %v409, %v409
      %v767 = vmul.f32 %v414, %v414
      %v768 = vmul.f32 %v417, %v417
      %v769 = vmul.f32 %v422, %v422
      %v770 = vmul.f32 %v425, %v425
      %v771 = vmul.f32 %v430, %v430
      %v772 = vmul.f32 %v433, %v433
      %v773 = vmul.f32 %v438, %v438
      %v774 = vmul.f32 %v441, %v441
      %v775 = vmul.f32 %v446, %v446
      %v776 = vmul.f32 %v449, %v449
      %v777 = vmul.f32 %v454, %v454
      %v778 = vmul.f32 %v457, %v457
      %v779 = vmul.f32 %v462, %v462
      %v780 = vmul.f32 %v465, %v465
      %v781 = vmul.f32 %v470, %v470
      %v782 = vmul.f32 %v473, %v473
      %v783 = vmul.f32 %v478, %v478
      %v784 = vmul.f32 %v481, %v481
      %v785 = vmul.f32 %v486, %v486
      %v786 = vmul.f32 %v489, %v489
      %v787 = vmul.f32 %v494, %v494
      %v788 = vmul.f32 %v497, %v497
      %v789 = vmul.f32 %v502, %v502
      %v790 = vmul.f32 %v505, %v505
      %v791 = vmul.f32 %v510, %v510
      %v792 = vmul.f32 %v513, %v513
      %v793 = vmul.f32 %v518, %v518
      %v794 = vmul.f32 %v521, %v521
      %v795 = vmul.f32 %v526, %v526
      %v796 = vmul.f32 %v529, %v529
      %v797 = vsel %vm693, %v765, 0.0
      %v798 = vsel %vm693, %v766, 0.0
      %v799 = vadd.f32 %v797, %v798
      %v800 = vsel %vm693, %v767, 0.0
      %v801 = vadd.f32 %v799, %v800
      %v802 = vsel %vm693, %v768, 0.0
      %v803 = vadd.f32 %v801, %v802
      %v804 = vsel %vm693, %v769, 0.0
      %v805 = vadd.f32 %v803, %v804
      %v806 = vsel %vm693, %v770, 0.0
      %v807 = vadd.f32 %v805, %v806
      %v808 = vsel %vm693, %v771, 0.0
      %v809 = vadd.f32 %v807, %v808
      %v810 = vsel %vm693, %v772, 0.0
      %v811 = vadd.f32 %v809, %v810
      %v812 = vsel %vm693, %v773, 0.0
      %v813 = vadd.f32 %v811, %v812
      %v814 = vsel %vm693, %v774, 0.0
      %v815 = vadd.f32 %v813, %v814
      %v816 = vsel %vm693, %v775, 0.0
      %v817 = vadd.f32 %v815, %v816
      %v818 = vsel %vm693, %v776, 0.0
      %v819 = vadd.f32 %v817, %v818
      %v820 = vsel %vm693, %v777, 0.0
      %v821 = vadd.f32 %v819, %v820
      %v822 = vsel %vm693, %v778, 0.0
      %v823 = vadd.f32 %v821, %v822
      %v824 = vsel %vm693, %v779, 0.0
      %v825 = vadd.f32 %v823, %v824
      %v826 = vsel %vm693, %v780, 0.0
      %v827 = vadd.f32 %v825, %v826
      %v828 = vsel %vm693, %v781, 0.0
      %v829 = vadd.f32 %v827, %v828
      %v830 = vsel %vm693, %v782, 0.0
      %v831 = vadd.f32 %v829, %v830
      %v832 = vsel %vm693, %v783, 0.0
      %v833 = vadd.f32 %v831, %v832
      %v834 = vsel %vm693, %v784, 0.0
      %v835 = vadd.f32 %v833, %v834
      %v836 = vsel %vm693, %v785, 0.0
      %v837 = vadd.f32 %v835, %v836
      %v838 = vsel %vm693, %v786, 0.0
      %v839 = vadd.f32 %v837, %v838
      %v840 = vsel %vm693, %v787, 0.0
      %v841 = vadd.f32 %v839, %v840
      %v842 = vsel %vm693, %v788, 0.0
      %v843 = vadd.f32 %v841, %v842
      %v844 = vsel %vm693, %v789, 0.0
      %v845 = vadd.f32 %v843, %v844
      %v846 = vsel %vm693, %v790, 0.0
      %v847 = vadd.f32 %v845, %v846
      %v848 = vsel %vm693, %v791, 0.0
      %v849 = vadd.f32 %v847, %v848
      %v850 = vsel %vm693, %v792, 0.0
      %v851 = vadd.f32 %v849, %v850
      %v852 = vsel %vm693, %v793, 0.0
      %v853 = vadd.f32 %v851, %v852
      %v854 = vsel %vm693, %v794, 0.0
      %v855 = vadd.f32 %v853, %v854
      %v856 = vsel %vm693, %v795, 0.0
      %v857 = vadd.f32 %v855, %v856
      %v858 = vsel %vm693, %v796, 0.0
      %v859 = vadd.f32 %v857, %v858
      %v860 = vrot.slane %v859, 4
      %v861 = vadd.f32 %v859, %v860
      %v862 = vrot.slane %v861, 2
      %v863 = vadd.f32 %v861, %v862
      %v864 = vrot.slane %v863, 1
      %v865 = vadd.f32 %v863, %v864
      %866 = vst.msk [vmem:[%s184 + $0x1] sm:$0x1] %vm763, %v865
      %s867 = smul.u32 32, %s15
      %p868 = scmp.lt.s32.totalorder %s867, 63
      %s869 = scalar_select %p868, %s867, 63
      %s870 = smul.addr %s869, 4
      %s871 = scalar_lea.vmem %s2, %s870
      %p872 = scmp.lt.s32.totalorder %s15, 1
      %s873 = scalar_select %p872, %s15, 1
      %s874 = smul.addr %s873, 2
      %s875 = scalar_lea.vmem %s3, %s874
      // Predicated region
      $region29: #{_lambda_.4} parent=27 // pred_check
        %p876 = pneg %p80
      $region30: #{_lambda_.4} parent=27 // pred_check_branch
        %878 = sbr.rel (%p876) target = $region32
      $region31: #{_lambda_.4} parent=27 // pred_region
        %s879 = smul.u32 32, %s15
      $region32: #{_lambda_.4} parent=27 // pred_fallthru
        _
      // Predicated region
      $region33: #{_lambda_.4} parent=27 // pred_check
        %p880 = pneg %p106
      $region34: #{_lambda_.4} parent=27 // pred_check_branch
        %882 = sbr.rel (%p880) target = $region36
      $region35: #{_lambda_.4} parent=27 // pred_region
        _
      $region36: #{_lambda_.4} parent=27 // pred_fallthru
        _
    $region28: #{_lambda_.4} parent=5 // pred_fallthru
      _
    %p883 = scmp.le.s32.totalorder 2, %s10
    // Predicated region
    $region37: #{_lambda_.4} parent=5 // pred_check
      %p884 = pneg %p883
    $region38: #{_lambda_.4} parent=5 // pred_check_branch
      %886 = sbr.rel (%p884) target = $region40
    $region39: #{_lambda_.4} parent=5 // pred_region
      %s887 = ssub.s32 %s10, 2
      // Predicated region
      $region41: #{_lambda_.4} parent=39 // pred_check
        %p888 = pneg %p86
      $region42: #{_lambda_.4} parent=39 // pred_check_branch
        %890 = sbr.rel (%p888) target = $region44
      $region43: #{_lambda_.4} parent=39 // pred_region
        %s891 = smul.u32 32, %s16
        %p892 = scmp.lt.s32.totalorder %s891, 63
        %s893 = scalar_select %p892, %s891, 63
        %s894 = smul.addr %s893, 4
        %s895 = scalar_lea.vmem %s2, %s894
      $region44: #{_lambda_.4} parent=39 // pred_fallthru
        _
      // Predicated region
      $region45: #{_lambda_.4} parent=39 // pred_check
        %p896 = pneg %p112
      $region46: #{_lambda_.4} parent=39 // pred_check_branch
        %898 = sbr.rel (%p896) target = $region48
      $region47: #{_lambda_.4} parent=39 // pred_region
        %p899 = scmp.lt.s32.totalorder %s16, 1
        %s900 = scalar_select %p899, %s16, 1
        %s901 = smul.addr %s900, 2
        %s902 = scalar_lea.vmem %s3, %s901
      $region48: #{_lambda_.4} parent=39 // pred_fallthru
        _
    $region40: #{_lambda_.4} parent=5 // pred_fallthru
      _
  $region6: #{_lambda_.4} parent=0 // loop_footer
    %s14 = sadd.s32 1, %s10
  $region7: #{_lambda_.4} parent=0 // loop_footer_branch
    %9 = sbr.rel target = $region3
  $region8: #{_lambda_.4} parent=0 // loop_exit
    _

// kernel: _lambda_.7
$region0: #{_lambda_.7}
  #allocation0 [shape = 'u32[]', space=smem, size = 0x4, offset = 0x4, fixed_abs, tag = 'smem constant byte address 0x4 - core index']
  #allocation1 [shape = 'u32[144,128]{1,0:T(1,128)}', space=vmem, size = 0x12000, scoped, tag = 'internal scratch']
  %s0 = inlined_call_operand.vmem [shape: bf16[512,4], index: 0, kind: input, shape index: {}]
  %s1 = inlined_call_operand.vmem [shape: f32[2,4], index: 1, kind: input, shape index: {}]
  %s2 = inlined_call_operand.vmem [shape: bf16[512,4], index: 2, kind: input, shape index: {}]
  %s3 = inlined_call_operand.vmem [shape: f32[512,4], index: 3, kind: output, shape index: {}]
  %s4 = sld [smem:[#allocation0]]
  $region45: #{_lambda_.7} parent=0
    _
  %s6 = ssub.s32 1, %s4
  %s7 = scalar_select 0, %s6, %s4
  loop: start=0, step=1, limit=4
  $region2: #{_lambda_.7} parent=0 // loop_pre_header
    _
  $region3: #{_lambda_.7} parent=0 // loop_header
    %s9 = sphi 0, %s13
    %p10 = scmp.ge.s32.totalorder %s9, 4
    %s19 = sphi 0, %s21
    %s22 = sphi 0, %s19
    %s23 = sphi 0, %s22
    %s39 = sphi 0, %s23
    %s43 = sphi 0, %s43
    %s45 = sphi 0, %s43
    %s46 = sphi 0, %s45
    %s60 = sphi 0, %s46
    %s66 = sphi 0, %s68
    %s69 = sphi 0, %s66
    %s70 = sphi 0, %s69
    %s86 = sphi 0, %s70
    %s92 = sphi 0, %s94
    %s95 = sphi 0, %s92
    %s96 = sphi 0, %s95
    %s112 = sphi 0, %s96
  $region4: #{_lambda_.7} parent=0 // loop_header_branch
    %12 = sbr.rel (%p10) target = $region8
  $region5: #{_lambda_.7} parent=0 // loop_body
    %s14 = ssub.s32 %s9, 1
    %s15 = ssub.s32 %s9, 2
    %s16 = sadd.s32 %s9, 1
    %s17 = ssub.s32 %s9, %s16
    %p18 = scmp.eq.s32.totalorder %s17, 0
    %s20 = sadd.s32 %s19, 1
    %s21 = scalar_select %p18, %s19, %s20
    %p24 = pneg %p18
    %p25 = scmp.eq.s32.totalorder %s9, 1
    %p26 = por %p24, %p25
    %p27 = scmp.ne.s32.totalorder %s19, %s22
    %p28 = scmp.eq.s32.totalorder %s9, 0
    %p29 = por %p27, %p28
    %p30 = scmp.ne.s32.totalorder %s19, %s22
    %p31 = scmp.eq.s32.totalorder %s14, 1
    %p32 = por %p30, %p31
    %p33 = scmp.ne.s32.totalorder %s22, %s23
    %p34 = scmp.eq.s32.totalorder %s14, 0
    %p35 = por %p33, %p34
    %p36 = scmp.ne.s32.totalorder %s22, %s23
    %p37 = scmp.eq.s32.totalorder %s15, 1
    %p38 = por %p36, %p37
    %p40 = scmp.ne.s32.totalorder %s23, %s39
    %p41 = scmp.eq.s32.totalorder %s15, 0
    %p42 = por %p40, %p41
    %s44 = sadd.s32 %s43, 1
    %p47 = scmp.eq.s32.totalorder %s9, 1
    %p48 = scmp.ne.s32.totalorder %s43, %s45
    %p49 = scmp.eq.s32.totalorder %s9, 0
    %p50 = por %p48, %p49
    %p51 = scmp.ne.s32.totalorder %s43, %s45
    %p52 = scmp.eq.s32.totalorder %s14, 1
    %p53 = por %p51, %p52
    %p54 = scmp.ne.s32.totalorder %s45, %s46
    %p55 = scmp.eq.s32.totalorder %s14, 0
    %p56 = por %p54, %p55
    %p57 = scmp.ne.s32.totalorder %s45, %s46
    %p58 = scmp.eq.s32.totalorder %s15, 1
    %p59 = por %p57, %p58
    %p61 = scmp.ne.s32.totalorder %s46, %s60
    %p62 = scmp.eq.s32.totalorder %s15, 0
    %p63 = por %p61, %p62
    %s64 = ssub.s32 %s9, %s16
    %p65 = scmp.eq.s32.totalorder %s64, 0
    %s67 = sadd.s32 %s66, 1
    %s68 = scalar_select %p65, %s66, %s67
    %p71 = pneg %p65
    %p72 = scmp.eq.s32.totalorder %s9, 1
    %p73 = por %p71, %p72
    %p74 = scmp.ne.s32.totalorder %s66, %s69
    %p75 = scmp.eq.s32.totalorder %s9, 0
    %p76 = por %p74, %p75
    %p77 = scmp.ne.s32.totalorder %s66, %s69
    %p78 = scmp.eq.s32.totalorder %s14, 1
    %p79 = por %p77, %p78
    %p80 = scmp.ne.s32.totalorder %s69, %s70
    %p81 = scmp.eq.s32.totalorder %s14, 0
    %p82 = por %p80, %p81
    %p83 = scmp.ne.s32.totalorder %s69, %s70
    %p84 = scmp.eq.s32.totalorder %s15, 1
    %p85 = por %p83, %p84
    %p87 = scmp.ne.s32.totalorder %s70, %s86
    %p88 = scmp.eq.s32.totalorder %s15, 0
    %p89 = por %p87, %p88
    %s90 = ssub.s32 %s9, %s16
    %p91 = scmp.eq.s32.totalorder %s90, 0
    %s93 = sadd.s32 %s92, 1
    %s94 = scalar_select %p91, %s92, %s93
    %p97 = pneg %p91
    %p98 = scmp.eq.s32.totalorder %s9, 1
    %p99 = por %p97, %p98
    %p100 = scmp.ne.s32.totalorder %s92, %s95
    %p101 = scmp.eq.s32.totalorder %s9, 0
    %p102 = por %p100, %p101
    %p103 = scmp.ne.s32.totalorder %s92, %s95
    %p104 = scmp.eq.s32.totalorder %s14, 1
    %p105 = por %p103, %p104
    %p106 = scmp.ne.s32.totalorder %s95, %s96
    %p107 = scmp.eq.s32.totalorder %s14, 0
    %p108 = por %p106, %p107
    %p109 = scmp.ne.s32.totalorder %s95, %s96
    %p110 = scmp.eq.s32.totalorder %s15, 1
    %p111 = por %p109, %p110
    %p113 = scmp.ne.s32.totalorder %s96, %s112
    %p114 = scmp.eq.s32.totalorder %s15, 0
    %p115 = por %p113, %p114
    %p116 = scmp.le.s32.totalorder 1, %s9
    %p117 = scmp.lt.s32.totalorder %s9, 3
    %p118 = pnand %p116, %p117
    %p119 = pneg %p118
    // Predicated region
    $region9: #{_lambda_.7} parent=5 // pred_check
      _
    $region10: #{_lambda_.7} parent=5 // pred_check_branch
      %121 = sbr.rel (%p118) target = $region12
    $region11: #{_lambda_.7} parent=5 // pred_region
      %s122 = ssub.s32 %s9, 1
      // Predicated region
      $region13: #{_lambda_.7} parent=11 // pred_check
        %p123 = pneg %p56
      $region14: #{_lambda_.7} parent=11 // pred_check_branch
        %125 = sbr.rel (%p123) target = $region16
      $region15: #{_lambda_.7} parent=11 // pred_region
        _
      $region16: #{_lambda_.7} parent=11 // pred_fallthru
        _
    $region12: #{_lambda_.7} parent=5 // pred_fallthru
      _
    %p126 = scmp.lt.s32.totalorder %s9, 2
    // Predicated region
    $region17: #{_lambda_.7} parent=5 // pred_check
      %p127 = pneg %p126
    $region18: #{_lambda_.7} parent=5 // pred_check_branch
      %129 = sbr.rel (%p127) target = $region20
    $region19: #{_lambda_.7} parent=5 // pred_region
      // Predicated region
      $region21: #{_lambda_.7} parent=19 // pred_check
        %p130 = pneg %p29
      $region22: #{_lambda_.7} parent=19 // pred_check_branch
        %132 = sbr.rel (%p130) target = $region24
      $region23: #{_lambda_.7} parent=19 // pred_region
        %s133 = smul.u32 32, %s9
        %p134 = scmp.lt.s32.totalorder %s133, 63
        %s135 = scalar_select %p134, %s133, 63
        %s136 = smul.addr %s135, 4
        %s137 = scalar_lea.vmem %s0, %s136
        %s138 = smul.u32 32, %s9
      $region24: #{_lambda_.7} parent=19 // pred_fallthru
        _
      // Predicated region
      $region25: #{_lambda_.7} parent=19 // pred_check
        %p139 = pneg %p76
      $region26: #{_lambda_.7} parent=19 // pred_check_branch
        %141 = sbr.rel (%p139) target = $region28
      $region27: #{_lambda_.7} parent=19 // pred_region
        %s142 = smul.u32 32, %s9
        %p143 = scmp.lt.s32.totalorder %s142, 63
        %s144 = scalar_select %p143, %s142, 63
        %s145 = smul.addr %s144, 4
        %s146 = scalar_lea.vmem %s2, %s145
        %s147 = smul.u32 32, %s9
      $region28: #{_lambda_.7} parent=19 // pred_fallthru
        _
    $region20: #{_lambda_.7} parent=5 // pred_fallthru
      _
    %p148 = scmp.le.s32.totalorder 1, %s9
    %p149 = scmp.lt.s32.totalorder %s9, 3
    %p150 = pnand %p148, %p149
    %p151 = pneg %p150
    // Predicated region
    $region29: #{_lambda_.7} parent=5 // pred_check
      _
    $region30: #{_lambda_.7} parent=5 // pred_check_branch
      %153 = sbr.rel (%p150) target = $region32
    $region31: #{_lambda_.7} parent=5 // pred_region
      %s154 = ssub.s32 %s9, 1
      %s155 = smul.u32 32, %s14
      %p156 = scmp.lt.s32.totalorder %s155, 63
      %s157 = scalar_select %p156, %s155, 63
      %s158 = smul.addr %s157, 4
      %s159 = scalar_lea.vmem %s0, %s158
      %p160 = pneg %p35
      %p161 = pneg %p32
      %p162 = pneg %p56
      %p163 = pneg %p53
      %s164 = smul.u32 32, %s14
      %p165 = scmp.lt.s32.totalorder %s164, 63
      %s166 = scalar_select %p165, %s164, 63
      %s167 = smul.addr %s166, 4
      %s168 = scalar_lea.vmem %s2, %s167
      %p169 = pneg %p82
      %p170 = pneg %p79
      %p171 = pneg %p108
      %p172 = pneg %p105
      %s173 = smul.u32 32, %s14
      %p174 = scmp.lt.s32.totalorder %s173, 63
      %s175 = scalar_select %p174, %s173, 63
      %s176 = smul.addr %s175, 8
      %s177 = scalar_lea.vmem %s3, %s176
      %s178 = smul.u32 32, %s14
      %p179 = scmp.lt.s32.totalorder %s178, 63
      %s180 = scalar_select %p179, %s178, 63
      %s181 = smul.addr %s180, 4
      %s182 = scalar_lea.vmem %s0, %s181
      %s183 = smul.u32 32, %s14
      %s184 = smul.u32 32, %s14
      %p185 = scmp.lt.s32.totalorder %s184, 63
      %s186 = scalar_select %p185, %s184, 63
      %s187 = smul.addr %s186, 4
      %s188 = scalar_lea.vmem %s2, %s187
      %s189 = smul.u32 32, %s14
      %s190 = smul.u32 32, %s14
      %p191 = scmp.lt.s32.totalorder %s190, 63
      %s192 = scalar_select %p191, %s190, 63
      %s193 = smul.addr %s192, 8
      %s194 = scalar_lea.vmem %s3, %s193
      %s195 = smul.u32 32, %s14
      %v196 = vld [vmem:[%s182] sm:$0xf]
      %v197 = vld [vmem:[%s182 + $0x4] sm:$0xf]
      %v198 = vld [vmem:[%s182 + $0x8] sm:$0xf]
      %v199 = vld [vmem:[%s182 + $0xc] sm:$0xf]
      %v200 = vld [vmem:[%s182 + $0x10] sm:$0xf]
      %v201 = vld [vmem:[%s182 + $0x14] sm:$0xf]
      %v202 = vld [vmem:[%s182 + $0x18] sm:$0xf]
      %v203 = vld [vmem:[%s182 + $0x1c] sm:$0xf]
      %v204 = vld [vmem:[%s182 + $0x20] sm:$0xf]
      %v205 = vld [vmem:[%s182 + $0x24] sm:$0xf]
      %v206 = vld [vmem:[%s182 + $0x28] sm:$0xf]
      %v207 = vld [vmem:[%s182 + $0x2c] sm:$0xf]
      %v208 = vld [vmem:[%s182 + $0x30] sm:$0xf]
      %v209 = vld [vmem:[%s182 + $0x34] sm:$0xf]
      %v210 = vld [vmem:[%s182 + $0x38] sm:$0xf]
      %v211 = vld [vmem:[%s182 + $0x3c] sm:$0xf]
      %v212 = vld [vmem:[%s182 + $0x40] sm:$0xf]
      %v213 = vld [vmem:[%s182 + $0x44] sm:$0xf]
      %v214 = vld [vmem:[%s182 + $0x48] sm:$0xf]
      %v215 = vld [vmem:[%s182 + $0x4c] sm:$0xf]
      %v216 = vld [vmem:[%s182 + $0x50] sm:$0xf]
      %v217 = vld [vmem:[%s182 + $0x54] sm:$0xf]
      %v218 = vld [vmem:[%s182 + $0x58] sm:$0xf]
      %v219 = vld [vmem:[%s182 + $0x5c] sm:$0xf]
      %v220 = vld [vmem:[%s182 + $0x60] sm:$0xf]
      %v221 = vld [vmem:[%s182 + $0x64] sm:$0xf]
      %v222 = vld [vmem:[%s182 + $0x68] sm:$0xf]
      %v223 = vld [vmem:[%s182 + $0x6c] sm:$0xf]
      %v224 = vld [vmem:[%s182 + $0x70] sm:$0xf]
      %v225 = vld [vmem:[%s182 + $0x74] sm:$0xf]
      %v226 = vld [vmem:[%s182 + $0x78] sm:$0xf]
      %v227 = vld [vmem:[%s182 + $0x7c] sm:$0xf]
      %v228 = vunpack.c.l.bf16 %v196
      %v229 = vunpack.c.l.bf16 %v197
      %v230 = vunpack.c.l.bf16 %v198
      %v231 = vunpack.c.l.bf16 %v199
      %v232 = vunpack.c.l.bf16 %v200
      %v233 = vunpack.c.l.bf16 %v201
      %v234 = vunpack.c.l.bf16 %v202
      %v235 = vunpack.c.l.bf16 %v203
      %v236 = vunpack.c.l.bf16 %v204
      %v237 = vunpack.c.l.bf16 %v205
      %v238 = vunpack.c.l.bf16 %v206
      %v239 = vunpack.c.l.bf16 %v207
      %v240 = vunpack.c.l.bf16 %v208
      %v241 = vunpack.c.l.bf16 %v209
      %v242 = vunpack.c.l.bf16 %v210
      %v243 = vunpack.c.l.bf16 %v211
      %v244 = vunpack.c.l.bf16 %v212
      %v245 = vunpack.c.l.bf16 %v213
      %v246 = vunpack.c.l.bf16 %v214
      %v247 = vunpack.c.l.bf16 %v215
      %v248 = vunpack.c.l.bf16 %v216
      %v249 = vunpack.c.l.bf16 %v217
      %v250 = vunpack.c.l.bf16 %v218
      %v251 = vunpack.c.l.bf16 %v219
      %v252 = vunpack.c.l.bf16 %v220
      %v253 = vunpack.c.l.bf16 %v221
      %v254 = vunpack.c.l.bf16 %v222
      %v255 = vunpack.c.l.bf16 %v223
      %v256 = vunpack.c.l.bf16 %v224
      %v257 = vunpack.c.l.bf16 %v225
      %v258 = vunpack.c.l.bf16 %v226
      %v259 = vunpack.c.l.bf16 %v227
      %v260 = vld [vmem:[%s1] sm:$0x1]
      %v261 = vlaneseq
      %v262 = vshrl.u32 %v261, 7
      %v263 = vsub.s32 0, %v262
      %v264 = vrot.slane %v260, %v263
      %v265 = vmul.f32 %v228, %v264
      %v266 = vmul.f32 %v229, %v264
      %v267 = vmul.f32 %v230, %v264
      %v268 = vmul.f32 %v231, %v264
      %v269 = vmul.f32 %v232, %v264
      %v270 = vmul.f32 %v233, %v264
      %v271 = vmul.f32 %v234, %v264
      %v272 = vmul.f32 %v235, %v264
      %v273 = vmul.f32 %v236, %v264
      %v274 = vmul.f32 %v237, %v264
      %v275 = vmul.f32 %v238, %v264
      %v276 = vmul.f32 %v239, %v264
      %v277 = vmul.f32 %v240, %v264
      %v278 = vmul.f32 %v241, %v264
      %v279 = vmul.f32 %v242, %v264
      %v280 = vmul.f32 %v243, %v264
      %v281 = vmul.f32 %v244, %v264
      %v282 = vmul.f32 %v245, %v264
      %v283 = vmul.f32 %v246, %v264
      %v284 = vmul.f32 %v247, %v264
      %v285 = vmul.f32 %v248, %v264
      %v286 = vmul.f32 %v249, %v264
      %v287 = vmul.f32 %v250, %v264
      %v288 = vmul.f32 %v251, %v264
      %v289 = vmul.f32 %v252, %v264
      %v290 = vmul.f32 %v253, %v264
      %v291 = vmul.f32 %v254, %v264
      %v292 = vmul.f32 %v255, %v264
      %v293 = vmul.f32 %v256, %v264
      %v294 = vmul.f32 %v257, %v264
      %v295 = vmul.f32 %v258, %v264
      %v296 = vmul.f32 %v259, %v264
      %v297 = vld [vmem:[%s1 + $0x1] sm:$0x1]
      %v298 = vlaneseq
      %v299 = vshrl.u32 %v298, 7
      %v300 = vsub.s32 0, %v299
      %v301 = vrot.slane %v297, %v300
      %v302 = vadd.f32 %v265, %v301
      %v303 = vadd.f32 %v266, %v301
      %v304 = vadd.f32 %v267, %v301
      %v305 = vadd.f32 %v268, %v301
      %v306 = vadd.f32 %v269, %v301
      %v307 = vadd.f32 %v270, %v301
      %v308 = vadd.f32 %v271, %v301
      %v309 = vadd.f32 %v272, %v301
      %v310 = vadd.f32 %v273, %v301
      %v311 = vadd.f32 %v274, %v301
      %v312 = vadd.f32 %v275, %v301
      %v313 = vadd.f32 %v276, %v301
      %v314 = vadd.f32 %v277, %v301
      %v315 = vadd.f32 %v278, %v301
      %v316 = vadd.f32 %v279, %v301
      %v317 = vadd.f32 %v280, %v301
      %v318 = vadd.f32 %v281, %v301
      %v319 = vadd.f32 %v282, %v301
      %v320 = vadd.f32 %v283, %v301
      %v321 = vadd.f32 %v284, %v301
      %v322 = vadd.f32 %v285, %v301
      %v323 = vadd.f32 %v286, %v301
      %v324 = vadd.f32 %v287, %v301
      %v325 = vadd.f32 %v288, %v301
      %v326 = vadd.f32 %v289, %v301
      %v327 = vadd.f32 %v290, %v301
      %v328 = vadd.f32 %v291, %v301
      %v329 = vadd.f32 %v292, %v301
      %v330 = vadd.f32 %v293, %v301
      %v331 = vadd.f32 %v294, %v301
      %v332 = vadd.f32 %v295, %v301
      %v333 = vadd.f32 %v296, %v301
      %v334 = vld [vmem:[%s188] sm:$0xf]
      %v335 = vld [vmem:[%s188 + $0x4] sm:$0xf]
      %v336 = vld [vmem:[%s188 + $0x8] sm:$0xf]
      %v337 = vld [vmem:[%s188 + $0xc] sm:$0xf]
      %v338 = vld [vmem:[%s188 + $0x10] sm:$0xf]
      %v339 = vld [vmem:[%s188 + $0x14] sm:$0xf]
      %v340 = vld [vmem:[%s188 + $0x18] sm:$0xf]
      %v341 = vld [vmem:[%s188 + $0x1c] sm:$0xf]
      %v342 = vld [vmem:[%s188 + $0x20] sm:$0xf]
      %v343 = vld [vmem:[%s188 + $0x24] sm:$0xf]
      %v344 = vld [vmem:[%s188 + $0x28] sm:$0xf]
      %v345 = vld [vmem:[%s188 + $0x2c] sm:$0xf]
      %v346 = vld [vmem:[%s188 + $0x30] sm:$0xf]
      %v347 = vld [vmem:[%s188 + $0x34] sm:$0xf]
      %v348 = vld [vmem:[%s188 + $0x38] sm:$0xf]
      %v349 = vld [vmem:[%s188 + $0x3c] sm:$0xf]
      %v350 = vld [vmem:[%s188 + $0x40] sm:$0xf]
      %v351 = vld [vmem:[%s188 + $0x44] sm:$0xf]
      %v352 = vld [vmem:[%s188 + $0x48] sm:$0xf]
      %v353 = vld [vmem:[%s188 + $0x4c] sm:$0xf]
      %v354 = vld [vmem:[%s188 + $0x50] sm:$0xf]
      %v355 = vld [vmem:[%s188 + $0x54] sm:$0xf]
      %v356 = vld [vmem:[%s188 + $0x58] sm:$0xf]
      %v357 = vld [vmem:[%s188 + $0x5c] sm:$0xf]
      %v358 = vld [vmem:[%s188 + $0x60] sm:$0xf]
      %v359 = vld [vmem:[%s188 + $0x64] sm:$0xf]
      %v360 = vld [vmem:[%s188 + $0x68] sm:$0xf]
      %v361 = vld [vmem:[%s188 + $0x6c] sm:$0xf]
      %v362 = vld [vmem:[%s188 + $0x70] sm:$0xf]
      %v363 = vld [vmem:[%s188 + $0x74] sm:$0xf]
      %v364 = vld [vmem:[%s188 + $0x78] sm:$0xf]
      %v365 = vld [vmem:[%s188 + $0x7c] sm:$0xf]
      %v366 = vunpack.c.l.bf16 %v334
      %v367 = vunpack.c.l.bf16 %v335
      %v368 = vunpack.c.l.bf16 %v336
      %v369 = vunpack.c.l.bf16 %v337
      %v370 = vunpack.c.l.bf16 %v338
      %v371 = vunpack.c.l.bf16 %v339
      %v372 = vunpack.c.l.bf16 %v340
      %v373 = vunpack.c.l.bf16 %v341
      %v374 = vunpack.c.l.bf16 %v342
      %v375 = vunpack.c.l.bf16 %v343
      %v376 = vunpack.c.l.bf16 %v344
      %v377 = vunpack.c.l.bf16 %v345
      %v378 = vunpack.c.l.bf16 %v346
      %v379 = vunpack.c.l.bf16 %v347
      %v380 = vunpack.c.l.bf16 %v348
      %v381 = vunpack.c.l.bf16 %v349
      %v382 = vunpack.c.l.bf16 %v350
      %v383 = vunpack.c.l.bf16 %v351
      %v384 = vunpack.c.l.bf16 %v352
      %v385 = vunpack.c.l.bf16 %v353
      %v386 = vunpack.c.l.bf16 %v354
      %v387 = vunpack.c.l.bf16 %v355
      %v388 = vunpack.c.l.bf16 %v356
      %v389 = vunpack.c.l.bf16 %v357
      %v390 = vunpack.c.l.bf16 %v358
      %v391 = vunpack.c.l.bf16 %v359
      %v392 = vunpack.c.l.bf16 %v360
      %v393 = vunpack.c.l.bf16 %v361
      %v394 = vunpack.c.l.bf16 %v362
      %v395 = vunpack.c.l.bf16 %v363
      %v396 = vunpack.c.l.bf16 %v364
      %v397 = vunpack.c.l.bf16 %v365
      %v398 = vadd.f32 %v302, %v366
      %v399 = vadd.f32 %v303, %v367
      %v400 = vadd.f32 %v304, %v368
      %v401 = vadd.f32 %v305, %v369
      %v402 = vadd.f32 %v306, %v370
      %v403 = vadd.f32 %v307, %v371
      %v404 = vadd.f32 %v308, %v372
      %v405 = vadd.f32 %v309, %v373
      %v406 = vadd.f32 %v310, %v374
      %v407 = vadd.f32 %v311, %v375
      %v408 = vadd.f32 %v312, %v376
      %v409 = vadd.f32 %v313, %v377
      %v410 = vadd.f32 %v314, %v378
      %v411 = vadd.f32 %v315, %v379
      %v412 = vadd.f32 %v316, %v380
      %v413 = vadd.f32 %v317, %v381
      %v414 = vadd.f32 %v318, %v382
      %v415 = vadd.f32 %v319, %v383
      %v416 = vadd.f32 %v320, %v384
      %v417 = vadd.f32 %v321, %v385
      %v418 = vadd.f32 %v322, %v386
      %v419 = vadd.f32 %v323, %v387
      %v420 = vadd.f32 %v324, %v388
      %v421 = vadd.f32 %v325, %v389
      %v422 = vadd.f32 %v326, %v390
      %v423 = vadd.f32 %v327, %v391
      %v424 = vadd.f32 %v328, %v392
      %v425 = vadd.f32 %v329, %v393
      %v426 = vadd.f32 %v330, %v394
      %v427 = vadd.f32 %v331, %v395
      %v428 = vadd.f32 %v332, %v396
      %v429 = vadd.f32 %v333, %v397
      %vm430 = vcmp.ge.f32.partialorder %v398, 0.0
      %vm431 = vcmp.ge.f32.partialorder %v399, 0.0
      %vm432 = vcmp.ge.f32.partialorder %v400, 0.0
      %vm433 = vcmp.ge.f32.partialorder %v401, 0.0
      %vm434 = vcmp.ge.f32.partialorder %v402, 0.0
      %vm435 = vcmp.ge.f32.partialorder %v403, 0.0
      %vm436 = vcmp.ge.f32.partialorder %v404, 0.0
      %vm437 = vcmp.ge.f32.partialorder %v405, 0.0
      %vm438 = vcmp.ge.f32.partialorder %v406, 0.0
      %vm439 = vcmp.ge.f32.partialorder %v407, 0.0
      %vm440 = vcmp.ge.f32.partialorder %v408, 0.0
      %vm441 = vcmp.ge.f32.partialorder %v409, 0.0
      %vm442 = vcmp.ge.f32.partialorder %v410, 0.0
      %vm443 = vcmp.ge.f32.partialorder %v411, 0.0
      %vm444 = vcmp.ge.f32.partialorder %v412, 0.0
      %vm445 = vcmp.ge.f32.partialorder %v413, 0.0
      %vm446 = vcmp.ge.f32.partialorder %v414, 0.0
      %vm447 = vcmp.ge.f32.partialorder %v415, 0.0
      %vm448 = vcmp.ge.f32.partialorder %v416, 0.0
      %vm449 = vcmp.ge.f32.partialorder %v417, 0.0
      %vm450 = vcmp.ge.f32.partialorder %v418, 0.0
      %vm451 = vcmp.ge.f32.partialorder %v419, 0.0
      %vm452 = vcmp.ge.f32.partialorder %v420, 0.0
      %vm453 = vcmp.ge.f32.partialorder %v421, 0.0
      %vm454 = vcmp.ge.f32.partialorder %v422, 0.0
      %vm455 = vcmp.ge.f32.partialorder %v423, 0.0
      %vm456 = vcmp.ge.f32.partialorder %v424, 0.0
      %vm457 = vcmp.ge.f32.partialorder %v425, 0.0
      %vm458 = vcmp.ge.f32.partialorder %v426, 0.0
      %vm459 = vcmp.ge.f32.partialorder %v427, 0.0
      %vm460 = vcmp.ge.f32.partialorder %v428, 0.0
      %vm461 = vcmp.ge.f32.partialorder %v429, 0.0
      %v462 = vmul.f32 %v398, 0.01
      %v463 = vmul.f32 %v399, 0.01
      %v464 = vmul.f32 %v400, 0.01
      %v465 = vmul.f32 %v401, 0.01
      %v466 = vmul.f32 %v402, 0.01
      %v467 = vmul.f32 %v403, 0.01
      %v468 = vmul.f32 %v404, 0.01
      %v469 = vmul.f32 %v405, 0.01
      %v470 = vmul.f32 %v406, 0.01
      %v471 = vmul.f32 %v407, 0.01
      %v472 = vmul.f32 %v408, 0.01
      %v473 = vmul.f32 %v409, 0.01
      %v474 = vmul.f32 %v410, 0.01
      %v475 = vmul.f32 %v411, 0.01
      %v476 = vmul.f32 %v412, 0.01
      %v477 = vmul.f32 %v413, 0.01
      %v478 = vmul.f32 %v414, 0.01
      %v479 = vmul.f32 %v415, 0.01
      %v480 = vmul.f32 %v416, 0.01
      %v481 = vmul.f32 %v417, 0.01
      %v482 = vmul.f32 %v418, 0.01
      %v483 = vmul.f32 %v419, 0.01
      %v484 = vmul.f32 %v420, 0.01
      %v485 = vmul.f32 %v421, 0.01
      %v486 = vmul.f32 %v422, 0.01
      %v487 = vmul.f32 %v423, 0.01
      %v488 = vmul.f32 %v424, 0.01
      %v489 = vmul.f32 %v425, 0.01
      %v490 = vmul.f32 %v426, 0.01
      %v491 = vmul.f32 %v427, 0.01
      %v492 = vmul.f32 %v428, 0.01
      %v493 = vmul.f32 %v429, 0.01
      %v494 = vsel %vm430, %v398, %v462
      %v495 = vsel %vm431, %v399, %v463
      %v496 = vsel %vm432, %v400, %v464
      %v497 = vsel %vm433, %v401, %v465
      %v498 = vsel %vm434, %v402, %v466
      %v499 = vsel %vm435, %v403, %v467
      %v500 = vsel %vm436, %v404, %v468
      %v501 = vsel %vm437, %v405, %v469
      %v502 = vsel %vm438, %v406, %v470
      %v503 = vsel %vm439, %v407, %v471
      %v504 = vsel %vm440, %v408, %v472
      %v505 = vsel %vm441, %v409, %v473
      %v506 = vsel %vm442, %v410, %v474
      %v507 = vsel %vm443, %v411, %v475
      %v508 = vsel %vm444, %v412, %v476
      %v509 = vsel %vm445, %v413, %v477
      %v510 = vsel %vm446, %v414, %v478
      %v511 = vsel %vm447, %v415, %v479
      %v512 = vsel %vm448, %v416, %v480
      %v513 = vsel %vm449, %v417, %v481
      %v514 = vsel %vm450, %v418, %v482
      %v515 = vsel %vm451, %v419, %v483
      %v516 = vsel %vm452, %v420, %v484
      %v517 = vsel %vm453, %v421, %v485
      %v518 = vsel %vm454, %v422, %v486
      %v519 = vsel %vm455, %v423, %v487
      %v520 = vsel %vm456, %v424, %v488
      %v521 = vsel %vm457, %v425, %v489
      %v522 = vsel %vm458, %v426, %v490
      %v523 = vsel %vm459, %v427, %v491
      %v524 = vsel %vm460, %v428, %v492
      %v525 = vsel %vm461, %v429, %v493
      %vm526 = vcmask 31744
      %527 = vst.msk [vmem:[%s194] sm:$0xff] %vm526, %v494
      %528 = vst.msk [vmem:[%s194 + $0x8] sm:$0xff] %vm526, %v495
      %529 = vst.msk [vmem:[%s194 + $0x10] sm:$0xff] %vm526, %v496
      %530 = vst.msk [vmem:[%s194 + $0x18] sm:$0xff] %vm526, %v497
      %531 = vst.msk [vmem:[%s194 + $0x20] sm:$0xff] %vm526, %v498
      %532 = vst.msk [vmem:[%s194 + $0x28] sm:$0xff] %vm526, %v499
      %533 = vst.msk [vmem:[%s194 + $0x30] sm:$0xff] %vm526, %v500
      %534 = vst.msk [vmem:[%s194 + $0x38] sm:$0xff] %vm526, %v501
      %535 = vst.msk [vmem:[%s194 + $0x40] sm:$0xff] %vm526, %v502
      %536 = vst.msk [vmem:[%s194 + $0x48] sm:$0xff] %vm526, %v503
      %537 = vst.msk [vmem:[%s194 + $0x50] sm:$0xff] %vm526, %v504
      %538 = vst.msk [vmem:[%s194 + $0x58] sm:$0xff] %vm526, %v505
      %539 = vst.msk [vmem:[%s194 + $0x60] sm:$0xff] %vm526, %v506
      %540 = vst.msk [vmem:[%s194 + $0x68] sm:$0xff] %vm526, %v507
      %541 = vst.msk [vmem:[%s194 + $0x70] sm:$0xff] %vm526, %v508
      %542 = vst.msk [vmem:[%s194 + $0x78] sm:$0xff] %vm526, %v509
      %543 = vst.msk [vmem:[%s194 + $0x80] sm:$0xff] %vm526, %v510
      %544 = vst.msk [vmem:[%s194 + $0x88] sm:$0xff] %vm526, %v511
      %545 = vst.msk [vmem:[%s194 + $0x90] sm:$0xff] %vm526, %v512
      %546 = vst.msk [vmem:[%s194 + $0x98] sm:$0xff] %vm526, %v513
      %547 = vst.msk [vmem:[%s194 + $0xa0] sm:$0xff] %vm526, %v514
      %548 = vst.msk [vmem:[%s194 + $0xa8] sm:$0xff] %vm526, %v515
      %549 = vst.msk [vmem:[%s194 + $0xb0] sm:$0xff] %vm526, %v516
      %550 = vst.msk [vmem:[%s194 + $0xb8] sm:$0xff] %vm526, %v517
      %551 = vst.msk [vmem:[%s194 + $0xc0] sm:$0xff] %vm526, %v518
      %552 = vst.msk [vmem:[%s194 + $0xc8] sm:$0xff] %vm526, %v519
      %553 = vst.msk [vmem:[%s194 + $0xd0] sm:$0xff] %vm526, %v520
      %554 = vst.msk [vmem:[%s194 + $0xd8] sm:$0xff] %vm526, %v521
      %555 = vst.msk [vmem:[%s194 + $0xe0] sm:$0xff] %vm526, %v522
      %556 = vst.msk [vmem:[%s194 + $0xe8] sm:$0xff] %vm526, %v523
      %557 = vst.msk [vmem:[%s194 + $0xf0] sm:$0xff] %vm526, %v524
      %558 = vst.msk [vmem:[%s194 + $0xf8] sm:$0xff] %vm526, %v525
      %s559 = smul.u32 32, %s14
      %p560 = scmp.lt.s32.totalorder %s559, 63
      %s561 = scalar_select %p560, %s559, 63
      %s562 = smul.addr %s561, 8
      %s563 = scalar_lea.vmem %s3, %s562
      // Predicated region
      $region33: #{_lambda_.7} parent=31 // pred_check
        %p564 = pneg %p105
      $region34: #{_lambda_.7} parent=31 // pred_check_branch
        %566 = sbr.rel (%p564) target = $region36
      $region35: #{_lambda_.7} parent=31 // pred_region
        %s567 = smul.u32 32, %s14
      $region36: #{_lambda_.7} parent=31 // pred_fallthru
        _
    $region32: #{_lambda_.7} parent=5 // pred_fallthru
      _
    %p568 = scmp.le.s32.totalorder 2, %s9
    // Predicated region
    $region37: #{_lambda_.7} parent=5 // pred_check
      %p569 = pneg %p568
    $region38: #{_lambda_.7} parent=5 // pred_check_branch
      %571 = sbr.rel (%p569) target = $region40
    $region39: #{_lambda_.7} parent=5 // pred_region
      %s572 = ssub.s32 %s9, 2
      // Predicated region
      $region41: #{_lambda_.7} parent=39 // pred_check
        %p573 = pneg %p111
      $region42: #{_lambda_.7} parent=39 // pred_check_branch
        %575 = sbr.rel (%p573) target = $region44
      $region43: #{_lambda_.7} parent=39 // pred_region
        %s576 = smul.u32 32, %s15
        %p577 = scmp.lt.s32.totalorder %s576, 63
        %s578 = scalar_select %p577, %s576, 63
        %s579 = smul.addr %s578, 8
        %s580 = scalar_lea.vmem %s3, %s579
      $region44: #{_lambda_.7} parent=39 // pred_fallthru
        _
    $region40: #{_lambda_.7} parent=5 // pred_fallthru
      _
  $region6: #{_lambda_.7} parent=0 // loop_footer
    %s13 = sadd.s32 1, %s9
  $region7: #{_lambda_.7} parent=0 // loop_footer_branch
    %8 = sbr.rel target = $region3
  $region8: #{_lambda_.7} parent=0 // loop_exit
    _

</llo_original>
